<compile_context>
chip_gen: v7x
topology: tpu7x:2x2x1
jax: 0.10.0
libtpu: 0.0.40
codegen_flags: <defaults>
</compile_context>

<pallas_src>
import functools

import jax
import jax.numpy as jnp
from jax import lax
from jax.experimental import pallas as pl
from jax.experimental.pallas import tpu as pltpu


def _round_up(x, m):
    return (x + m - 1) // m * m


def _cornn_kernel(u_ref, wzy_ref, wro_ref, bro_ref, out_ref, hzy_ref, *,
                  chunk, n_hid_p, seq, mask_tail, dt, gamma, epsilon,
                  matmul_dtype, unroll):
    c = pl.program_id(0)

    # Initialize the packed carried state [hz | hy] on the first time chunk.
    @pl.when(c == 0)
    def _():
        hzy_ref[...] = jnp.zeros_like(hzy_ref)

    # Strength-reduced constants (folded at trace time).
    decay = 1.0 - dt * epsilon     # multiplies hz
    dgam = dt * gamma              # multiplies hy

    def body(t, carry):
        hzy = hzy_ref[...]                         # (Bp, 2*Hp) f32, packed [hz | hy]
        # One fused recurrent MXU matmul per step on the packed state,
        # bf16 operands / f32 accumulation.
        # TODO(synk): keep Wzy weight-stationary across the unrolled loop via the
        # explicit MXU API if the bundle dump shows the RHS re-pushed each step.
        pre = u_ref[t] + jnp.dot(hzy.astype(matmul_dtype), wzy_ref[...],
                                 preferred_element_type=jnp.float32)
        hz = hzy[:, :n_hid_p]                      # static 128-aligned slices (free)
        hy = hzy[:, n_hid_p:]
        hz_new = decay * hz + dt * jnp.tanh(pre) - dgam * hy
        hy_new = hy + dt * hz_new
        if mask_tail:
            # Ragged last chunk: padded time steps must NOT evolve the state.
            valid = (c * chunk + t) < seq
            hz_new = jnp.where(valid, hz_new, hz)
            hy_new = jnp.where(valid, hy_new, hy)
        hzy_ref[:, :n_hid_p] = hz_new              # lane-aligned unmasked stores
        hzy_ref[:, n_hid_p:] = hy_new
        return carry

    lax.fori_loop(0, chunk, body, 0, unroll=unroll)

    # Readout only after the final chunk (output block is resident across the grid).
    @pl.when(c == pl.num_programs(0) - 1)
    def _():
        hy = hzy_ref[:, n_hid_p:]
        out_ref[...] = (jnp.dot(hy.astype(matmul_dtype), wro_ref[...],
                                preferred_element_type=jnp.float32)
                        + bro_ref[...])


def cornn_forward(x, w_i2h, b_i2h, w_ro, b_ro, *, dt, gamma, epsilon,
                  time_chunk=None, unroll=8, matmul_dtype=jnp.bfloat16,
                  u_block_budget_bytes=16 << 20):
    """x: (seq, batch, n_inp) f32; weights in PyTorch nn.Linear layout.

    Returns (batch, n_out) f32, matching coRNN.forward.
    """
    seq, batch, n_inp = x.shape
    n_hid = w_i2h.shape[0]
    n_out = w_ro.shape[0]

    batch_p = _round_up(batch, 8)          # sublane-aligned
    n_hid_p = _round_up(n_hid, 128)        # lane-aligned
    n_out_p = _round_up(n_out, 128)        # lane-dense output store

    # ---- VMEM-budgeted time chunking (bounded streamed block; no seq fallback). ----
    u_row_bytes = batch_p * n_hid_p * 4
    if time_chunk is None:
        time_chunk = max(1, u_block_budget_bytes // (2 * u_row_bytes))
    time_chunk = int(min(max(int(time_chunk), 1), seq))
    num_chunks = pl.cdiv(seq, time_chunk)
    seq_pad = num_chunks * time_chunk
    mask_tail = seq_pad != seq

    # ---- Split the i2h weight along the cat((x, hz, hy)) axis; transpose so the
    #      kernel computes plain `inp @ W`. ----
    wT = w_i2h.T.astype(jnp.float32)                 # (n_inp + 2*n_hid, n_hid)
    wx = wT[:n_inp]                                  # (n_inp, n_hid)
    wz = wT[n_inp:n_inp + n_hid]                     # (n_hid, n_hid)
    wy = wT[n_inp + n_hid:]                          # (n_hid, n_hid)

    # ---- Hoisted input projection over the whole sequence (parallel XLA matmul,
    #      off the serial critical path):  u[t] = x[t] @ Wx + b. ----
    u = jnp.matmul(x.astype(jnp.float32), wx,
                   precision=jax.lax.Precision.HIGHEST) + b_i2h.astype(jnp.float32)
    u_p = jnp.zeros((seq_pad, batch_p, n_hid_p), jnp.float32)
    u_p = u_p.at[:seq, :batch, :n_hid].set(u)        # padded lanes/rows/steps stay 0

    # ---- Packed recurrent weight [Wz ; Wy] and readout, zero-padded to tiles,
    #      stored in the matmul dtype (bf16 by default). ----
    wzy_p = jnp.zeros((2 * n_hid_p, n_hid_p), jnp.float32)
    wzy_p = wzy_p.at[:n_hid, :n_hid].set(wz)                      # Wz rows
    wzy_p = wzy_p.at[n_hid_p:n_hid_p + n_hid, :n_hid].set(wy)     # Wy rows
    wzy_p = wzy_p.astype(matmul_dtype)
    wro_p = (jnp.zeros((n_hid_p, n_out_p), jnp.float32)
             .at[:n_hid, :n_out].set(w_ro.T.astype(jnp.float32))
             .astype(matmul_dtype))
    bro_p = jnp.zeros((1, n_out_p), jnp.float32).at[:, :n_out].set(
        b_ro.astype(jnp.float32))

    # ---- Explicit VMEM limit with headroom (fits v7x's 64 MiB). ----
    itemsize = jnp.dtype(matmul_dtype).itemsize
    needed_bytes = (
        2 * time_chunk * u_row_bytes                                  # u, 2 buffers
        + 2 * (2 * n_hid_p * n_hid_p + n_hid_p * n_out_p) * itemsize  # weights
        + 2 * n_out_p * 4                                             # bro
        + 2 * batch_p * n_out_p * 4                                   # out
        + batch_p * 2 * n_hid_p * 4)                                  # packed state
    vmem_limit = int(min(max(needed_bytes + (8 << 20), 32 << 20), 120 << 20))

    kernel = functools.partial(
        _cornn_kernel, chunk=time_chunk, n_hid_p=n_hid_p, seq=seq,
        mask_tail=mask_tail, dt=float(dt), gamma=float(gamma),
        epsilon=float(epsilon), matmul_dtype=matmul_dtype,
        unroll=int(max(1, min(unroll, time_chunk))))

    out_p = pl.pallas_call(
        kernel,
        out_shape=jax.ShapeDtypeStruct((batch_p, n_out_p), jnp.float32),
        grid_spec=pltpu.PrefetchScalarGridSpec(
            num_scalar_prefetch=0,
            grid=(num_chunks,),
            in_specs=[
                pl.BlockSpec((time_chunk, batch_p, n_hid_p),
                             lambda c: (c, 0, 0)),                        # u chunk
                pl.BlockSpec((2 * n_hid_p, n_hid_p), lambda c: (0, 0)),   # [Wz;Wy]
                pl.BlockSpec((n_hid_p, n_out_p), lambda c: (0, 0)),       # Wro
                pl.BlockSpec((1, n_out_p), lambda c: (0, 0)),             # bro
            ],
            out_specs=pl.BlockSpec((batch_p, n_out_p), lambda c: (0, 0)),
            scratch_shapes=[
                pltpu.VMEM((batch_p, 2 * n_hid_p), jnp.float32),  # packed [hz|hy]
            ],
        ),
        compiler_params=pltpu.CompilerParams(
            dimension_semantics=("arbitrary",),
            vmem_limit_bytes=vmem_limit),
    )(u_p, wzy_p, wro_p, bro_p)

    return out_p[:batch, :n_out]


def cornn_reference(x, w_i2h, b_i2h, w_ro, b_ro, *, dt, gamma, epsilon):
    """Pure-JAX reference mirroring the PyTorch forward exactly."""
    seq, batch, _ = x.shape
    n_hid = w_i2h.shape[0]
    hp = jax.lax.Precision.HIGHEST
    hy = jnp.zeros((batch, n_hid), jnp.float32)
    hz = jnp.zeros((batch, n_hid), jnp.float32)
    for t in range(seq):
        inp = jnp.concatenate([x[t], hz, hy], axis=1)
        pre = jnp.dot(inp, w_i2h.T, precision=hp) + b_i2h
        hz = hz + dt * (jnp.tanh(pre) - gamma * hy - epsilon * hz)
        hy = hy + dt * hz
    return jnp.dot(hy, w_ro.T, precision=hp) + b_ro


if __name__ == "__main__":
    # Small shapes consistent with the module's forward.
    # TODO(synk): the original script loads burgers_shock.mat; synthetic inputs
    # are used here since data loading is outside the module's forward pass.
    seq, batch, n_inp, n_hid, n_out = 8, 2, 4, 32, 2
    dt, gamma, epsilon = 0.1, 1.0, 1.0

    key = jax.random.PRNGKey(0)
    kx, kw1, kb1, kw2, kb2 = jax.random.split(key, 5)

    x = jax.random.normal(kx, (seq, batch, n_inp), dtype=jnp.float32)

    # nn.Linear(n_inp + 2*n_hid, n_hid): weight (n_hid, n_inp+2*n_hid), bias (n_hid,)
    fan_in_i2h = n_inp + 2 * n_hid
    bound1 = fan_in_i2h ** -0.5
    w_i2h = jax.random.uniform(kw1, (n_hid, fan_in_i2h), jnp.float32, -bound1, bound1)
    b_i2h = jax.random.uniform(kb1, (n_hid,), jnp.float32, -bound1, bound1)

    # nn.Linear(n_hid, n_out)
    bound2 = n_hid ** -0.5
    w_ro = jax.random.uniform(kw2, (n_out, n_hid), jnp.float32, -bound2, bound2)
    b_ro = jax.random.uniform(kb2, (n_out,), jnp.float32, -bound2, bound2)

    ref = cornn_reference(x, w_i2h, b_i2h, w_ro, b_ro,
                          dt=dt, gamma=gamma, epsilon=epsilon)

    # Default path: bf16 matmul operands, f32 state, budget-derived time chunk.
    out_bf16 = cornn_forward(x, w_i2h, b_i2h, w_ro, b_ro,
                             dt=dt, gamma=gamma, epsilon=epsilon)
    out_bf16 = jax.block_until_ready(out_bf16)
    assert out_bf16.shape == (batch, n_out)
    assert jnp.allclose(out_bf16, ref, atol=5e-3, rtol=1e-2), (out_bf16, ref)

    # f32 path with a ragged time chunk (exercises tail masking across chunks).
    out_f32 = cornn_forward(x, w_i2h, b_i2h, w_ro, b_ro,
                            dt=dt, gamma=gamma, epsilon=epsilon,
                            time_chunk=3, unroll=4, matmul_dtype=jnp.float32)
    out_f32 = jax.block_until_ready(out_f32)
    assert jnp.allclose(out_f32, ref, atol=1e-4, rtol=1e-4), (out_f32, ref)

    print("KERNEL_OK")
</pallas_src>

<mosaic_0001>
module attributes {stable_mosaic.version = 11 : i64} {
  func.func @_cornn_kernel(%arg0: i32, %arg1: memref<8x8x128xf32, #tpu.memory_space<vmem>>, %arg2: memref<256x128xbf16, #tpu.memory_space<vmem>>, %arg3: memref<128x128xbf16, #tpu.memory_space<vmem>>, %arg4: memref<1x128xf32, #tpu.memory_space<vmem>>, %arg5: memref<8x128xf32, #tpu.memory_space<vmem>>, %arg6: memref<8x256xf32, #tpu.memory_space<vmem>>) attributes {dimension_semantics = [#tpu.dimension_semantics<arbitrary>], iteration_bounds = array<i64: 1>, scalar_prefetch = 0 : i64, scratch_operands = 1 : i64, tpu.core_type = #tpu.core_type<tc>, window_params = [{transform_indices = @transform_0, window_bounds = array<i64: 8, 8, 128>}, {pipeline_mode = #tpu.pipeline_mode<synchronous>, transform_indices = @transform_1, window_bounds = array<i64: 256, 128>}, {pipeline_mode = #tpu.pipeline_mode<synchronous>, transform_indices = @transform_2, window_bounds = array<i64: 128, 128>}, {pipeline_mode = #tpu.pipeline_mode<synchronous>, transform_indices = @transform_3, window_bounds = array<i64: 1, 128>}, {pipeline_mode = #tpu.pipeline_mode<synchronous>, transform_indices = @transform_4, window_bounds = array<i64: 8, 128>}]} {
    %c0_i32 = arith.constant 0 : i32
    %0 = arith.cmpi eq, %arg0, %c0_i32 : i32
    %1 = arith.extui %0 : i1 to i32
    %c0_i32_0 = arith.constant 0 : i32
    %2 = arith.cmpi ne, %1, %c0_i32_0 : i32
    scf.if %2 {
      %cst_121 = arith.constant 0.000000e+00 : f32
      %198 = vector.broadcast %cst_121 : f32 to vector<8x256xf32>
      %c0_122 = arith.constant 0 : index
      %c0_123 = arith.constant 0 : index
      %199 = vector.load %arg6[%c0_122, %c0_123] : memref<8x256xf32, #tpu.memory_space<vmem>>, vector<8x256xf32>
      tpu.vector_store %arg6[%c0_122, %c0_123], %198 {strides = array<i32>} : memref<8x256xf32, #tpu.memory_space<vmem>>, vector<8x256xf32>,
    } else {
    }
    %c0_i32_1 = arith.constant 0 : i32
    %c0 = arith.constant 0 : index
    %c0_2 = arith.constant 0 : index
    %3 = vector.load %arg6[%c0, %c0_2] : memref<8x256xf32, #tpu.memory_space<vmem>>, vector<8x256xf32>
    %4 = arith.index_cast %c0_i32_1 : i32 to index
    %c0_3 = arith.constant 0 : index
    %c0_4 = arith.constant 0 : index
    %5 = vector.load %arg1[%4, %c0_3, %c0_4] : memref<8x8x128xf32, #tpu.memory_space<vmem>>, vector<1x8x128xf32>
    %6 = vector.shape_cast %5 : vector<1x8x128xf32> to vector<8x128xf32>
    %7 = arith.truncf %3 : vector<8x256xf32> to vector<8x256xbf16>
    %c0_5 = arith.constant 0 : index
    %c0_6 = arith.constant 0 : index
    %8 = vector.load %arg2[%c0_5, %c0_6] : memref<256x128xbf16, #tpu.memory_space<vmem>>, vector<256x128xbf16>
    %cst = arith.constant dense<0.000000e+00> : vector<8x128xf32>
    %9 = tpu.matmul %7, %8, %cst {dimension_numbers = #tpu.dot_dimension_numbers<[1], [0], [0], [1], [0, 0, 1, 1], [], []>} : vector<8x256xbf16>, vector<256x128xbf16>, vector<8x128xf32> -> vector<8x128xf32>
    %10 = arith.addf %6, %9 : vector<8x128xf32>
    %11 = vector.extract_strided_slice %3 {offsets = [0, 0], sizes = [8, 128], strides = [1, 1]} : vector<8x256xf32> to vector<8x128xf32>
    %12 = vector.extract_strided_slice %3 {offsets = [0, 128], sizes = [8, 128], strides = [1, 1]} : vector<8x256xf32> to vector<8x128xf32>
    %cst_7 = arith.constant 0.899999976 : f32
    %13 = vector.broadcast %cst_7 : f32 to vector<8x128xf32>
    %14 = arith.mulf %13, %11 : vector<8x128xf32>
    %15 = math.tanh %10 : vector<8x128xf32>
    %cst_8 = arith.constant 1.000000e-01 : f32
    %16 = vector.broadcast %cst_8 : f32 to vector<8x128xf32>
    %17 = arith.mulf %16, %15 : vector<8x128xf32>
    %18 = arith.addf %14, %17 : vector<8x128xf32>
    %cst_9 = arith.constant 1.000000e-01 : f32
    %19 = vector.broadcast %cst_9 : f32 to vector<8x128xf32>
    %20 = arith.mulf %19, %12 : vector<8x128xf32>
    %21 = arith.subf %18, %20 : vector<8x128xf32>
    %cst_10 = arith.constant 1.000000e-01 : f32
    %22 = vector.broadcast %cst_10 : f32 to vector<8x128xf32>
    %23 = arith.mulf %22, %21 : vector<8x128xf32>
    %24 = arith.addf %12, %23 : vector<8x128xf32>
    %c0_11 = arith.constant 0 : index
    %c0_12 = arith.constant 0 : index
    %25 = vector.load %arg6[%c0_11, %c0_12] : memref<8x256xf32, #tpu.memory_space<vmem>>, vector<8x128xf32>
    tpu.vector_store %arg6[%c0_11, %c0_12], %21 {strides = array<i32>} : memref<8x256xf32, #tpu.memory_space<vmem>>, vector<8x128xf32>,
    %c0_13 = arith.constant 0 : index
    %c128 = arith.constant 128 : index
    %26 = vector.load %arg6[%c0_13, %c128] : memref<8x256xf32, #tpu.memory_space<vmem>>, vector<8x128xf32>
    tpu.vector_store %arg6[%c0_13, %c128], %24 {strides = array<i32>} : memref<8x256xf32, #tpu.memory_space<vmem>>, vector<8x128xf32>,
    %c1_i32 = arith.constant 1 : i32
    %c0_14 = arith.constant 0 : index
    %c0_15 = arith.constant 0 : index
    %27 = vector.load %arg6[%c0_14, %c0_15] : memref<8x256xf32, #tpu.memory_space<vmem>>, vector<8x256xf32>
    %28 = arith.index_cast %c1_i32 : i32 to index
    %c0_16 = arith.constant 0 : index
    %c0_17 = arith.constant 0 : index
    %29 = vector.load %arg1[%28, %c0_16, %c0_17] : memref<8x8x128xf32, #tpu.memory_space<vmem>>, vector<1x8x128xf32>
    %30 = vector.shape_cast %29 : vector<1x8x128xf32> to vector<8x128xf32>
    %31 = arith.truncf %27 : vector<8x256xf32> to vector<8x256xbf16>
    %c0_18 = arith.constant 0 : index
    %c0_19 = arith.constant 0 : index
    %32 = vector.load %arg2[%c0_18, %c0_19] : memref<256x128xbf16, #tpu.memory_space<vmem>>, vector<256x128xbf16>
    %cst_20 = arith.constant dense<0.000000e+00> : vector<8x128xf32>
    %33 = tpu.matmul %31, %32, %cst_20 {dimension_numbers = #tpu.dot_dimension_numbers<[1], [0], [0], [1], [0, 0, 1, 1], [], []>} : vector<8x256xbf16>, vector<256x128xbf16>, vector<8x128xf32> -> vector<8x128xf32>
    %34 = arith.addf %30, %33 : vector<8x128xf32>
    %35 = vector.extract_strided_slice %27 {offsets = [0, 0], sizes = [8, 128], strides = [1, 1]} : vector<8x256xf32> to vector<8x128xf32>
    %36 = vector.extract_strided_slice %27 {offsets = [0, 128], sizes = [8, 128], strides = [1, 1]} : vector<8x256xf32> to vector<8x128xf32>
    %cst_21 = arith.constant 0.899999976 : f32
    %37 = vector.broadcast %cst_21 : f32 to vector<8x128xf32>
    %38 = arith.mulf %37, %35 : vector<8x128xf32>
    %39 = math.tanh %34 : vector<8x128xf32>
    %cst_22 = arith.constant 1.000000e-01 : f32
    %40 = vector.broadcast %cst_22 : f32 to vector<8x128xf32>
    %41 = arith.mulf %40, %39 : vector<8x128xf32>
    %42 = arith.addf %38, %41 : vector<8x128xf32>
    %cst_23 = arith.constant 1.000000e-01 : f32
    %43 = vector.broadcast %cst_23 : f32 to vector<8x128xf32>
    %44 = arith.mulf %43, %36 : vector<8x128xf32>
    %45 = arith.subf %42, %44 : vector<8x128xf32>
    %cst_24 = arith.constant 1.000000e-01 : f32
    %46 = vector.broadcast %cst_24 : f32 to vector<8x128xf32>
    %47 = arith.mulf %46, %45 : vector<8x128xf32>
    %48 = arith.addf %36, %47 : vector<8x128xf32>
    %c0_25 = arith.constant 0 : index
    %c0_26 = arith.constant 0 : index
    %49 = vector.load %arg6[%c0_25, %c0_26] : memref<8x256xf32, #tpu.memory_space<vmem>>, vector<8x128xf32>
    tpu.vector_store %arg6[%c0_25, %c0_26], %45 {strides = array<i32>} : memref<8x256xf32, #tpu.memory_space<vmem>>, vector<8x128xf32>,
    %c0_27 = arith.constant 0 : index
    %c128_28 = arith.constant 128 : index
    %50 = vector.load %arg6[%c0_27, %c128_28] : memref<8x256xf32, #tpu.memory_space<vmem>>, vector<8x128xf32>
    tpu.vector_store %arg6[%c0_27, %c128_28], %48 {strides = array<i32>} : memref<8x256xf32, #tpu.memory_space<vmem>>, vector<8x128xf32>,
    %c2_i32 = arith.constant 2 : i32
    %c0_29 = arith.constant 0 : index
    %c0_30 = arith.constant 0 : index
    %51 = vector.load %arg6[%c0_29, %c0_30] : memref<8x256xf32, #tpu.memory_space<vmem>>, vector<8x256xf32>
    %52 = arith.index_cast %c2_i32 : i32 to index
    %c0_31 = arith.constant 0 : index
    %c0_32 = arith.constant 0 : index
    %53 = vector.load %arg1[%52, %c0_31, %c0_32] : memref<8x8x128xf32, #tpu.memory_space<vmem>>, vector<1x8x128xf32>
    %54 = vector.shape_cast %53 : vector<1x8x128xf32> to vector<8x128xf32>
    %55 = arith.truncf %51 : vector<8x256xf32> to vector<8x256xbf16>
    %c0_33 = arith.constant 0 : index
    %c0_34 = arith.constant 0 : index
    %56 = vector.load %arg2[%c0_33, %c0_34] : memref<256x128xbf16, #tpu.memory_space<vmem>>, vector<256x128xbf16>
    %cst_35 = arith.constant dense<0.000000e+00> : vector<8x128xf32>
    %57 = tpu.matmul %55, %56, %cst_35 {dimension_numbers = #tpu.dot_dimension_numbers<[1], [0], [0], [1], [0, 0, 1, 1], [], []>} : vector<8x256xbf16>, vector<256x128xbf16>, vector<8x128xf32> -> vector<8x128xf32>
    %58 = arith.addf %54, %57 : vector<8x128xf32>
    %59 = vector.extract_strided_slice %51 {offsets = [0, 0], sizes = [8, 128], strides = [1, 1]} : vector<8x256xf32> to vector<8x128xf32>
    %60 = vector.extract_strided_slice %51 {offsets = [0, 128], sizes = [8, 128], strides = [1, 1]} : vector<8x256xf32> to vector<8x128xf32>
    %cst_36 = arith.constant 0.899999976 : f32
    %61 = vector.broadcast %cst_36 : f32 to vector<8x128xf32>
    %62 = arith.mulf %61, %59 : vector<8x128xf32>
    %63 = math.tanh %58 : vector<8x128xf32>
    %cst_37 = arith.constant 1.000000e-01 : f32
    %64 = vector.broadcast %cst_37 : f32 to vector<8x128xf32>
    %65 = arith.mulf %64, %63 : vector<8x128xf32>
    %66 = arith.addf %62, %65 : vector<8x128xf32>
    %cst_38 = arith.constant 1.000000e-01 : f32
    %67 = vector.broadcast %cst_38 : f32 to vector<8x128xf32>
    %68 = arith.mulf %67, %60 : vector<8x128xf32>
    %69 = arith.subf %66, %68 : vector<8x128xf32>
    %cst_39 = arith.constant 1.000000e-01 : f32
    %70 = vector.broadcast %cst_39 : f32 to vector<8x128xf32>
    %71 = arith.mulf %70, %69 : vector<8x128xf32>
    %72 = arith.addf %60, %71 : vector<8x128xf32>
    %c0_40 = arith.constant 0 : index
    %c0_41 = arith.constant 0 : index
    %73 = vector.load %arg6[%c0_40, %c0_41] : memref<8x256xf32, #tpu.memory_space<vmem>>, vector<8x128xf32>
    tpu.vector_store %arg6[%c0_40, %c0_41], %69 {strides = array<i32>} : memref<8x256xf32, #tpu.memory_space<vmem>>, vector<8x128xf32>,
    %c0_42 = arith.constant 0 : index
    %c128_43 = arith.constant 128 : index
    %74 = vector.load %arg6[%c0_42, %c128_43] : memref<8x256xf32, #tpu.memory_space<vmem>>, vector<8x128xf32>
    tpu.vector_store %arg6[%c0_42, %c128_43], %72 {strides = array<i32>} : memref<8x256xf32, #tpu.memory_space<vmem>>, vector<8x128xf32>,
    %c3_i32 = arith.constant 3 : i32
    %c0_44 = arith.constant 0 : index
    %c0_45 = arith.constant 0 : index
    %75 = vector.load %arg6[%c0_44, %c0_45] : memref<8x256xf32, #tpu.memory_space<vmem>>, vector<8x256xf32>
    %76 = arith.index_cast %c3_i32 : i32 to index
    %c0_46 = arith.constant 0 : index
    %c0_47 = arith.constant 0 : index
    %77 = vector.load %arg1[%76, %c0_46, %c0_47] : memref<8x8x128xf32, #tpu.memory_space<vmem>>, vector<1x8x128xf32>
    %78 = vector.shape_cast %77 : vector<1x8x128xf32> to vector<8x128xf32>
    %79 = arith.truncf %75 : vector<8x256xf32> to vector<8x256xbf16>
    %c0_48 = arith.constant 0 : index
    %c0_49 = arith.constant 0 : index
    %80 = vector.load %arg2[%c0_48, %c0_49] : memref<256x128xbf16, #tpu.memory_space<vmem>>, vector<256x128xbf16>
    %cst_50 = arith.constant dense<0.000000e+00> : vector<8x128xf32>
    %81 = tpu.matmul %79, %80, %cst_50 {dimension_numbers = #tpu.dot_dimension_numbers<[1], [0], [0], [1], [0, 0, 1, 1], [], []>} : vector<8x256xbf16>, vector<256x128xbf16>, vector<8x128xf32> -> vector<8x128xf32>
    %82 = arith.addf %78, %81 : vector<8x128xf32>
    %83 = vector.extract_strided_slice %75 {offsets = [0, 0], sizes = [8, 128], strides = [1, 1]} : vector<8x256xf32> to vector<8x128xf32>
    %84 = vector.extract_strided_slice %75 {offsets = [0, 128], sizes = [8, 128], strides = [1, 1]} : vector<8x256xf32> to vector<8x128xf32>
    %cst_51 = arith.constant 0.899999976 : f32
    %85 = vector.broadcast %cst_51 : f32 to vector<8x128xf32>
    %86 = arith.mulf %85, %83 : vector<8x128xf32>
    %87 = math.tanh %82 : vector<8x128xf32>
    %cst_52 = arith.constant 1.000000e-01 : f32
    %88 = vector.broadcast %cst_52 : f32 to vector<8x128xf32>
    %89 = arith.mulf %88, %87 : vector<8x128xf32>
    %90 = arith.addf %86, %89 : vector<8x128xf32>
    %cst_53 = arith.constant 1.000000e-01 : f32
    %91 = vector.broadcast %cst_53 : f32 to vector<8x128xf32>
    %92 = arith.mulf %91, %84 : vector<8x128xf32>
    %93 = arith.subf %90, %92 : vector<8x128xf32>
    %cst_54 = arith.constant 1.000000e-01 : f32
    %94 = vector.broadcast %cst_54 : f32 to vector<8x128xf32>
    %95 = arith.mulf %94, %93 : vector<8x128xf32>
    %96 = arith.addf %84, %95 : vector<8x128xf32>
    %c0_55 = arith.constant 0 : index
    %c0_56 = arith.constant 0 : index
    %97 = vector.load %arg6[%c0_55, %c0_56] : memref<8x256xf32, #tpu.memory_space<vmem>>, vector<8x128xf32>
    tpu.vector_store %arg6[%c0_55, %c0_56], %93 {strides = array<i32>} : memref<8x256xf32, #tpu.memory_space<vmem>>, vector<8x128xf32>,
    %c0_57 = arith.constant 0 : index
    %c128_58 = arith.constant 128 : index
    %98 = vector.load %arg6[%c0_57, %c128_58] : memref<8x256xf32, #tpu.memory_space<vmem>>, vector<8x128xf32>
    tpu.vector_store %arg6[%c0_57, %c128_58], %96 {strides = array<i32>} : memref<8x256xf32, #tpu.memory_space<vmem>>, vector<8x128xf32>,
    %c4_i32 = arith.constant 4 : i32
    %c0_59 = arith.constant 0 : index
    %c0_60 = arith.constant 0 : index
    %99 = vector.load %arg6[%c0_59, %c0_60] : memref<8x256xf32, #tpu.memory_space<vmem>>, vector<8x256xf32>
    %100 = arith.index_cast %c4_i32 : i32 to index
    %c0_61 = arith.constant 0 : index
    %c0_62 = arith.constant 0 : index
    %101 = vector.load %arg1[%100, %c0_61, %c0_62] : memref<8x8x128xf32, #tpu.memory_space<vmem>>, vector<1x8x128xf32>
    %102 = vector.shape_cast %101 : vector<1x8x128xf32> to vector<8x128xf32>
    %103 = arith.truncf %99 : vector<8x256xf32> to vector<8x256xbf16>
    %c0_63 = arith.constant 0 : index
    %c0_64 = arith.constant 0 : index
    %104 = vector.load %arg2[%c0_63, %c0_64] : memref<256x128xbf16, #tpu.memory_space<vmem>>, vector<256x128xbf16>
    %cst_65 = arith.constant dense<0.000000e+00> : vector<8x128xf32>
    %105 = tpu.matmul %103, %104, %cst_65 {dimension_numbers = #tpu.dot_dimension_numbers<[1], [0], [0], [1], [0, 0, 1, 1], [], []>} : vector<8x256xbf16>, vector<256x128xbf16>, vector<8x128xf32> -> vector<8x128xf32>
    %106 = arith.addf %102, %105 : vector<8x128xf32>
    %107 = vector.extract_strided_slice %99 {offsets = [0, 0], sizes = [8, 128], strides = [1, 1]} : vector<8x256xf32> to vector<8x128xf32>
    %108 = vector.extract_strided_slice %99 {offsets = [0, 128], sizes = [8, 128], strides = [1, 1]} : vector<8x256xf32> to vector<8x128xf32>
    %cst_66 = arith.constant 0.899999976 : f32
    %109 = vector.broadcast %cst_66 : f32 to vector<8x128xf32>
    %110 = arith.mulf %109, %107 : vector<8x128xf32>
    %111 = math.tanh %106 : vector<8x128xf32>
    %cst_67 = arith.constant 1.000000e-01 : f32
    %112 = vector.broadcast %cst_67 : f32 to vector<8x128xf32>
    %113 = arith.mulf %112, %111 : vector<8x128xf32>
    %114 = arith.addf %110, %113 : vector<8x128xf32>
    %cst_68 = arith.constant 1.000000e-01 : f32
    %115 = vector.broadcast %cst_68 : f32 to vector<8x128xf32>
    %116 = arith.mulf %115, %108 : vector<8x128xf32>
    %117 = arith.subf %114, %116 : vector<8x128xf32>
    %cst_69 = arith.constant 1.000000e-01 : f32
    %118 = vector.broadcast %cst_69 : f32 to vector<8x128xf32>
    %119 = arith.mulf %118, %117 : vector<8x128xf32>
    %120 = arith.addf %108, %119 : vector<8x128xf32>
    %c0_70 = arith.constant 0 : index
    %c0_71 = arith.constant 0 : index
    %121 = vector.load %arg6[%c0_70, %c0_71] : memref<8x256xf32, #tpu.memory_space<vmem>>, vector<8x128xf32>
    tpu.vector_store %arg6[%c0_70, %c0_71], %117 {strides = array<i32>} : memref<8x256xf32, #tpu.memory_space<vmem>>, vector<8x128xf32>,
    %c0_72 = arith.constant 0 : index
    %c128_73 = arith.constant 128 : index
    %122 = vector.load %arg6[%c0_72, %c128_73] : memref<8x256xf32, #tpu.memory_space<vmem>>, vector<8x128xf32>
    tpu.vector_store %arg6[%c0_72, %c128_73], %120 {strides = array<i32>} : memref<8x256xf32, #tpu.memory_space<vmem>>, vector<8x128xf32>,
    %c5_i32 = arith.constant 5 : i32
    %c0_74 = arith.constant 0 : index
    %c0_75 = arith.constant 0 : index
    %123 = vector.load %arg6[%c0_74, %c0_75] : memref<8x256xf32, #tpu.memory_space<vmem>>, vector<8x256xf32>
    %124 = arith.index_cast %c5_i32 : i32 to index
    %c0_76 = arith.constant 0 : index
    %c0_77 = arith.constant 0 : index
    %125 = vector.load %arg1[%124, %c0_76, %c0_77] : memref<8x8x128xf32, #tpu.memory_space<vmem>>, vector<1x8x128xf32>
    %126 = vector.shape_cast %125 : vector<1x8x128xf32> to vector<8x128xf32>
    %127 = arith.truncf %123 : vector<8x256xf32> to vector<8x256xbf16>
    %c0_78 = arith.constant 0 : index
    %c0_79 = arith.constant 0 : index
    %128 = vector.load %arg2[%c0_78, %c0_79] : memref<256x128xbf16, #tpu.memory_space<vmem>>, vector<256x128xbf16>
    %cst_80 = arith.constant dense<0.000000e+00> : vector<8x128xf32>
    %129 = tpu.matmul %127, %128, %cst_80 {dimension_numbers = #tpu.dot_dimension_numbers<[1], [0], [0], [1], [0, 0, 1, 1], [], []>} : vector<8x256xbf16>, vector<256x128xbf16>, vector<8x128xf32> -> vector<8x128xf32>
    %130 = arith.addf %126, %129 : vector<8x128xf32>
    %131 = vector.extract_strided_slice %123 {offsets = [0, 0], sizes = [8, 128], strides = [1, 1]} : vector<8x256xf32> to vector<8x128xf32>
    %132 = vector.extract_strided_slice %123 {offsets = [0, 128], sizes = [8, 128], strides = [1, 1]} : vector<8x256xf32> to vector<8x128xf32>
    %cst_81 = arith.constant 0.899999976 : f32
    %133 = vector.broadcast %cst_81 : f32 to vector<8x128xf32>
    %134 = arith.mulf %133, %131 : vector<8x128xf32>
    %135 = math.tanh %130 : vector<8x128xf32>
    %cst_82 = arith.constant 1.000000e-01 : f32
    %136 = vector.broadcast %cst_82 : f32 to vector<8x128xf32>
    %137 = arith.mulf %136, %135 : vector<8x128xf32>
    %138 = arith.addf %134, %137 : vector<8x128xf32>
    %cst_83 = arith.constant 1.000000e-01 : f32
    %139 = vector.broadcast %cst_83 : f32 to vector<8x128xf32>
    %140 = arith.mulf %139, %132 : vector<8x128xf32>
    %141 = arith.subf %138, %140 : vector<8x128xf32>
    %cst_84 = arith.constant 1.000000e-01 : f32
    %142 = vector.broadcast %cst_84 : f32 to vector<8x128xf32>
    %143 = arith.mulf %142, %141 : vector<8x128xf32>
    %144 = arith.addf %132, %143 : vector<8x128xf32>
    %c0_85 = arith.constant 0 : index
    %c0_86 = arith.constant 0 : index
    %145 = vector.load %arg6[%c0_85, %c0_86] : memref<8x256xf32, #tpu.memory_space<vmem>>, vector<8x128xf32>
    tpu.vector_store %arg6[%c0_85, %c0_86], %141 {strides = array<i32>} : memref<8x256xf32, #tpu.memory_space<vmem>>, vector<8x128xf32>,
    %c0_87 = arith.constant 0 : index
    %c128_88 = arith.constant 128 : index
    %146 = vector.load %arg6[%c0_87, %c128_88] : memref<8x256xf32, #tpu.memory_space<vmem>>, vector<8x128xf32>
    tpu.vector_store %arg6[%c0_87, %c128_88], %144 {strides = array<i32>} : memref<8x256xf32, #tpu.memory_space<vmem>>, vector<8x128xf32>,
    %c6_i32 = arith.constant 6 : i32
    %c0_89 = arith.constant 0 : index
    %c0_90 = arith.constant 0 : index
    %147 = vector.load %arg6[%c0_89, %c0_90] : memref<8x256xf32, #tpu.memory_space<vmem>>, vector<8x256xf32>
    %148 = arith.index_cast %c6_i32 : i32 to index
    %c0_91 = arith.constant 0 : index
    %c0_92 = arith.constant 0 : index
    %149 = vector.load %arg1[%148, %c0_91, %c0_92] : memref<8x8x128xf32, #tpu.memory_space<vmem>>, vector<1x8x128xf32>
    %150 = vector.shape_cast %149 : vector<1x8x128xf32> to vector<8x128xf32>
    %151 = arith.truncf %147 : vector<8x256xf32> to vector<8x256xbf16>
    %c0_93 = arith.constant 0 : index
    %c0_94 = arith.constant 0 : index
    %152 = vector.load %arg2[%c0_93, %c0_94] : memref<256x128xbf16, #tpu.memory_space<vmem>>, vector<256x128xbf16>
    %cst_95 = arith.constant dense<0.000000e+00> : vector<8x128xf32>
    %153 = tpu.matmul %151, %152, %cst_95 {dimension_numbers = #tpu.dot_dimension_numbers<[1], [0], [0], [1], [0, 0, 1, 1], [], []>} : vector<8x256xbf16>, vector<256x128xbf16>, vector<8x128xf32> -> vector<8x128xf32>
    %154 = arith.addf %150, %153 : vector<8x128xf32>
    %155 = vector.extract_strided_slice %147 {offsets = [0, 0], sizes = [8, 128], strides = [1, 1]} : vector<8x256xf32> to vector<8x128xf32>
    %156 = vector.extract_strided_slice %147 {offsets = [0, 128], sizes = [8, 128], strides = [1, 1]} : vector<8x256xf32> to vector<8x128xf32>
    %cst_96 = arith.constant 0.899999976 : f32
    %157 = vector.broadcast %cst_96 : f32 to vector<8x128xf32>
    %158 = arith.mulf %157, %155 : vector<8x128xf32>
    %159 = math.tanh %154 : vector<8x128xf32>
    %cst_97 = arith.constant 1.000000e-01 : f32
    %160 = vector.broadcast %cst_97 : f32 to vector<8x128xf32>
    %161 = arith.mulf %160, %159 : vector<8x128xf32>
    %162 = arith.addf %158, %161 : vector<8x128xf32>
    %cst_98 = arith.constant 1.000000e-01 : f32
    %163 = vector.broadcast %cst_98 : f32 to vector<8x128xf32>
    %164 = arith.mulf %163, %156 : vector<8x128xf32>
    %165 = arith.subf %162, %164 : vector<8x128xf32>
    %cst_99 = arith.constant 1.000000e-01 : f32
    %166 = vector.broadcast %cst_99 : f32 to vector<8x128xf32>
    %167 = arith.mulf %166, %165 : vector<8x128xf32>
    %168 = arith.addf %156, %167 : vector<8x128xf32>
    %c0_100 = arith.constant 0 : index
    %c0_101 = arith.constant 0 : index
    %169 = vector.load %arg6[%c0_100, %c0_101] : memref<8x256xf32, #tpu.memory_space<vmem>>, vector<8x128xf32>
    tpu.vector_store %arg6[%c0_100, %c0_101], %165 {strides = array<i32>} : memref<8x256xf32, #tpu.memory_space<vmem>>, vector<8x128xf32>,
    %c0_102 = arith.constant 0 : index
    %c128_103 = arith.constant 128 : index
    %170 = vector.load %arg6[%c0_102, %c128_103] : memref<8x256xf32, #tpu.memory_space<vmem>>, vector<8x128xf32>
    tpu.vector_store %arg6[%c0_102, %c128_103], %168 {strides = array<i32>} : memref<8x256xf32, #tpu.memory_space<vmem>>, vector<8x128xf32>,
    %c7_i32 = arith.constant 7 : i32
    %c0_104 = arith.constant 0 : index
    %c0_105 = arith.constant 0 : index
    %171 = vector.load %arg6[%c0_104, %c0_105] : memref<8x256xf32, #tpu.memory_space<vmem>>, vector<8x256xf32>
    %172 = arith.index_cast %c7_i32 : i32 to index
    %c0_106 = arith.constant 0 : index
    %c0_107 = arith.constant 0 : index
    %173 = vector.load %arg1[%172, %c0_106, %c0_107] : memref<8x8x128xf32, #tpu.memory_space<vmem>>, vector<1x8x128xf32>
    %174 = vector.shape_cast %173 : vector<1x8x128xf32> to vector<8x128xf32>
    %175 = arith.truncf %171 : vector<8x256xf32> to vector<8x256xbf16>
    %c0_108 = arith.constant 0 : index
    %c0_109 = arith.constant 0 : index
    %176 = vector.load %arg2[%c0_108, %c0_109] : memref<256x128xbf16, #tpu.memory_space<vmem>>, vector<256x128xbf16>
    %cst_110 = arith.constant dense<0.000000e+00> : vector<8x128xf32>
    %177 = tpu.matmul %175, %176, %cst_110 {dimension_numbers = #tpu.dot_dimension_numbers<[1], [0], [0], [1], [0, 0, 1, 1], [], []>} : vector<8x256xbf16>, vector<256x128xbf16>, vector<8x128xf32> -> vector<8x128xf32>
    %178 = arith.addf %174, %177 : vector<8x128xf32>
    %179 = vector.extract_strided_slice %171 {offsets = [0, 0], sizes = [8, 128], strides = [1, 1]} : vector<8x256xf32> to vector<8x128xf32>
    %180 = vector.extract_strided_slice %171 {offsets = [0, 128], sizes = [8, 128], strides = [1, 1]} : vector<8x256xf32> to vector<8x128xf32>
    %cst_111 = arith.constant 0.899999976 : f32
    %181 = vector.broadcast %cst_111 : f32 to vector<8x128xf32>
    %182 = arith.mulf %181, %179 : vector<8x128xf32>
    %183 = math.tanh %178 : vector<8x128xf32>
    %cst_112 = arith.constant 1.000000e-01 : f32
    %184 = vector.broadcast %cst_112 : f32 to vector<8x128xf32>
    %185 = arith.mulf %184, %183 : vector<8x128xf32>
    %186 = arith.addf %182, %185 : vector<8x128xf32>
    %cst_113 = arith.constant 1.000000e-01 : f32
    %187 = vector.broadcast %cst_113 : f32 to vector<8x128xf32>
    %188 = arith.mulf %187, %180 : vector<8x128xf32>
    %189 = arith.subf %186, %188 : vector<8x128xf32>
    %cst_114 = arith.constant 1.000000e-01 : f32
    %190 = vector.broadcast %cst_114 : f32 to vector<8x128xf32>
    %191 = arith.mulf %190, %189 : vector<8x128xf32>
    %192 = arith.addf %180, %191 : vector<8x128xf32>
    %c0_115 = arith.constant 0 : index
    %c0_116 = arith.constant 0 : index
    %193 = vector.load %arg6[%c0_115, %c0_116] : memref<8x256xf32, #tpu.memory_space<vmem>>, vector<8x128xf32>
    tpu.vector_store %arg6[%c0_115, %c0_116], %189 {strides = array<i32>} : memref<8x256xf32, #tpu.memory_space<vmem>>, vector<8x128xf32>,
    %c0_117 = arith.constant 0 : index
    %c128_118 = arith.constant 128 : index
    %194 = vector.load %arg6[%c0_117, %c128_118] : memref<8x256xf32, #tpu.memory_space<vmem>>, vector<8x128xf32>
    tpu.vector_store %arg6[%c0_117, %c128_118], %192 {strides = array<i32>} : memref<8x256xf32, #tpu.memory_space<vmem>>, vector<8x128xf32>,
    %c8_i32 = arith.constant 8 : i32
    %c0_i32_119 = arith.constant 0 : i32
    %195 = arith.cmpi eq, %arg0, %c0_i32_119 : i32
    %196 = arith.extui %195 : i1 to i32
    %c0_i32_120 = arith.constant 0 : i32
    %197 = arith.cmpi ne, %196, %c0_i32_120 : i32
    scf.if %197 {
      %c0_121 = arith.constant 0 : index
      %c128_122 = arith.constant 128 : index
      %198 = vector.load %arg6[%c0_121, %c128_122] : memref<8x256xf32, #tpu.memory_space<vmem>>, vector<8x128xf32>
      %199 = arith.truncf %198 : vector<8x128xf32> to vector<8x128xbf16>
      %c0_123 = arith.constant 0 : index
      %c0_124 = arith.constant 0 : index
      %200 = vector.load %arg3[%c0_123, %c0_124] : memref<128x128xbf16, #tpu.memory_space<vmem>>, vector<128x128xbf16>
      %cst_125 = arith.constant dense<0.000000e+00> : vector<8x128xf32>
      %201 = tpu.matmul %199, %200, %cst_125 {dimension_numbers = #tpu.dot_dimension_numbers<[1], [0], [0], [1], [0, 0, 1, 1], [], []>} : vector<8x128xbf16>, vector<128x128xbf16>, vector<8x128xf32> -> vector<8x128xf32>
      %c0_126 = arith.constant 0 : index
      %c0_127 = arith.constant 0 : index
      %202 = vector.load %arg4[%c0_126, %c0_127] : memref<1x128xf32, #tpu.memory_space<vmem>>, vector<1x128xf32>
      %203 = vector.broadcast %202 : vector<1x128xf32> to vector<8x128xf32>
      %204 = arith.addf %201, %203 : vector<8x128xf32>
      %c0_128 = arith.constant 0 : index
      %c0_129 = arith.constant 0 : index
      %205 = vector.load %arg5[%c0_128, %c0_129] : memref<8x128xf32, #tpu.memory_space<vmem>>, vector<8x128xf32>
      tpu.vector_store %arg5[%c0_128, %c0_129], %204 {strides = array<i32>} : memref<8x128xf32, #tpu.memory_space<vmem>>, vector<8x128xf32>,
    } else {
    }
    return
  }
  func.func @transform_0(%arg0: i32) -> (i32, i32, i32) {
    %c0_i32 = arith.constant 0 : i32
    %c0_i32_0 = arith.constant 0 : i32
    %c0_i32_1 = arith.constant 0 : i32
    return %arg0, %c0_i32, %c0_i32_0 : i32, i32, i32
  }
  func.func @transform_1(%arg0: i32) -> (i32, i32) {
    %c0_i32 = arith.constant 0 : i32
    %c0_i32_0 = arith.constant 0 : i32
    %c0_i32_1 = arith.constant 0 : i32
    return %c0_i32, %c0_i32_0 : i32, i32
  }
  func.func @transform_2(%arg0: i32) -> (i32, i32) {
    %c0_i32 = arith.constant 0 : i32
    %c0_i32_0 = arith.constant 0 : i32
    %c0_i32_1 = arith.constant 0 : i32
    return %c0_i32, %c0_i32_0 : i32, i32
  }
  func.func @transform_3(%arg0: i32) -> (i32, i32) {
    %c0_i32 = arith.constant 0 : i32
    %c0_i32_0 = arith.constant 0 : i32
    %c0_i32_1 = arith.constant 0 : i32
    return %c0_i32, %c0_i32_0 : i32, i32
  }
  func.func @transform_4(%arg0: i32) -> (i32, i32) {
    %c0_i32 = arith.constant 0 : i32
    %c0_i32_0 = arith.constant 0 : i32
    %c0_i32_1 = arith.constant 0 : i32
    return %c0_i32, %c0_i32_0 : i32, i32
  }
}

</mosaic_0001>

<llo_original>
// kernel: tpu_custom_call.1
$region0: #{tpu_custom_call.1}
  #allocation0 [shape = 'u32[]', space=smem, size = 0x4, offset = 0x4, fixed_abs, tag = 'smem constant byte address 0x4 - core index']
  #allocation1 [shape = 'u32[144,128]{1,0:T(1,128)}', space=vmem, size = 0x12000, scoped, tag = 'internal scratch']
  #allocation2 [shape = 'f32[8,256]{1,0:T(8,128)}', space=vmem, size = 0x2000, scoped, tag = 'scratch operand']
  %s0 = inlined_call_operand.hbm [shape: f32[8,8,128], index: 0, kind: input, shape index: {}]
  %s1 = inlined_call_operand.hbm [shape: bf16[256,128], index: 1, kind: input, shape index: {}]
  %s2 = inlined_call_operand.hbm [shape: bf16[128,128], index: 2, kind: input, shape index: {}]
  %s3 = inlined_call_operand.vmem [shape: f32[1,128], index: 3, kind: input, shape index: {}]
  %s4 = inlined_call_operand.hbm [shape: f32[8,128], index: 4, kind: output, shape index: {}]
  %s5 = sld [smem:[#allocation0]]
  $region46: #{tpu_custom_call.1} parent=0
    _
  %s7 = ssub.s32 1, %s5
  %s8 = scalar_select 0, %s7, %s5
  $region1: #{tpu_custom_call.1} parent=0
    #allocation3 [shape = 'u8[32768]{0}', space=vmem, size = 0x8000, scoped, tag = 'input window, operand 0, single buffered']
    #allocation4 [shape = 's32[1]{0}', space=sflag, size = 0x4, scoped, tag = 'scoped memory for tpu_custom_call.1']
    #allocation5 [shape = 's32[1]{0}', space=sflag, size = 0x4, scoped, tag = 'scoped memory for tpu_custom_call.1']
    #allocation6 [shape = 'u8[65536]{0}', space=vmem, size = 0x10000, scoped, tag = 'input window, operand 1, single buffered']
    #allocation7 [shape = 's32[1]{0}', space=sflag, size = 0x4, scoped, tag = 'scoped memory for tpu_custom_call.1']
    #allocation8 [shape = 'u8[32768]{0}', space=vmem, size = 0x8000, scoped, tag = 'input window, operand 2, single buffered']
    #allocation9 [shape = 'u8[4096]{0}', space=vmem, size = 0x1000, scoped, tag = 'output window, operand 0, single buffered']
    %9 = vsyncpa [#allocation4], 0
    %10 = vsyncpa [#allocation7], 0
    %11 = vsyncpa [#allocation5], 0
    // Predicated region
    $region2: #{tpu_custom_call.1} parent=1 // pred_check
      _
    $region3: #{tpu_custom_call.1} parent=1 // pred_check_branch
      %13 = sbr.rel (0) target = $region5
    $region4: #{tpu_custom_call.1} parent=1 // pred_region
      %s15 = ssub.s32 1024, 1024
      %16 = vsyncadd [#allocation4], %s15
      %s17 = sshll.u32 [#allocation3], 4
      %s18 = int_to_ptr.vmem [resolvable:$true] %s17
      %23 = dma.hbm_to_vmem [thread:$0]  %s0, 1024, %s18, [#allocation4], 128, 128, 8
    $region5: #{tpu_custom_call.1} parent=1 // pred_fallthru
      _
    // Predicated region
    $region6: #{tpu_custom_call.1} parent=1 // pred_check
      _
    $region7: #{tpu_custom_call.1} parent=1 // pred_check_branch
      %25 = sbr.rel (0) target = $region9
    $region8: #{tpu_custom_call.1} parent=1 // pred_region
      %s27 = ssub.s32 2048, 2048
      %28 = vsyncadd [#allocation7], %s27
      %s29 = sshll.u32 [#allocation6], 4
      %s30 = int_to_ptr.vmem [resolvable:$true] %s29
      %35 = dma.hbm_to_vmem [thread:$0]  %s1, 2048, %s30, [#allocation7], 64, 64, 4
    $region9: #{tpu_custom_call.1} parent=1 // pred_fallthru
      _
    // Predicated region
    $region10: #{tpu_custom_call.1} parent=1 // pred_check
      _
    $region11: #{tpu_custom_call.1} parent=1 // pred_check_branch
      %37 = sbr.rel (0) target = $region13
    $region12: #{tpu_custom_call.1} parent=1 // pred_region
      %s39 = ssub.s32 1024, 1024
      %40 = vsyncadd [#allocation7], %s39
      %s41 = sshll.u32 [#allocation8], 4
      %s42 = int_to_ptr.vmem [resolvable:$true] %s41
      %47 = dma.hbm_to_vmem [thread:$0]  %s2, 1024, %s42, [#allocation7], 64, 64, 4
    $region13: #{tpu_custom_call.1} parent=1 // pred_fallthru
      _
    // Predicated region
    $region14: #{tpu_custom_call.1} parent=1 // pred_check
      _
    $region15: #{tpu_custom_call.1} parent=1 // pred_check_branch
      %49 = sbr.rel (0) target = $region17
    $region16: #{tpu_custom_call.1} parent=1 // pred_region
      _
    $region17: #{tpu_custom_call.1} parent=1 // pred_fallthru
      _
    // Predicated region
    $region18: #{tpu_custom_call.1} parent=1 // pred_check
      _
    $region19: #{tpu_custom_call.1} parent=1 // pred_check_branch
      %51 = sbr.rel (0) target = $region21
    $region20: #{tpu_custom_call.1} parent=1 // pred_region
      %52 = dma.done [#allocation4], 1024
    $region21: #{tpu_custom_call.1} parent=1 // pred_fallthru
      _
    // Predicated region
    $region22: #{tpu_custom_call.1} parent=1 // pred_check
      _
    $region23: #{tpu_custom_call.1} parent=1 // pred_check_branch
      %54 = sbr.rel (0) target = $region25
    $region24: #{tpu_custom_call.1} parent=1 // pred_region
      %55 = dma.done [#allocation7], 2048
    $region25: #{tpu_custom_call.1} parent=1 // pred_fallthru
      _
    // Predicated region
    $region26: #{tpu_custom_call.1} parent=1 // pred_check
      _
    $region27: #{tpu_custom_call.1} parent=1 // pred_check_branch
      %57 = sbr.rel (0) target = $region29
    $region28: #{tpu_custom_call.1} parent=1 // pred_region
      %58 = dma.done [#allocation7], 1024
    $region29: #{tpu_custom_call.1} parent=1 // pred_fallthru
      _
    %p60 = scmp.eq.s32.totalorder 0, 0
    // Predicated region
    $region30: #{tpu_custom_call.1} parent=1 // pred_check
      %p61 = pneg %p60
    $region31: #{tpu_custom_call.1} parent=1 // pred_check_branch
      %63 = sbr.rel (%p61) target = $region33
    $region32: #{tpu_custom_call.1} parent=1 // pred_region
      %64 = vst [vmem:[#allocation2] sm:$0xff] 0.0
      %65 = vst [vmem:[#allocation2 + $0x8] sm:$0xff] 0.0
    $region33: #{tpu_custom_call.1} parent=1 // pred_fallthru
      _
    %v66 = vld [vmem:[#allocation2] sm:$0xff]
    %v67 = vld [vmem:[#allocation2 + $0x8] sm:$0xff]
    %v68 = vld [vmem:[#allocation3] sm:$0xff]
    %v69 = vpack.c.bf16 %v66, %v66
    %v70 = vpack.c.bf16 %v67, %v67
    %v71 = vld [vmem:[#allocation6] sm:$0xf]
    %v72 = vld [vmem:[#allocation6 + $0x4] sm:$0xf]
    %v73 = vld [vmem:[#allocation6 + $0x8] sm:$0xf]
    %v74 = vld [vmem:[#allocation6 + $0xc] sm:$0xf]
    %v75 = vld [vmem:[#allocation6 + $0x10] sm:$0xf]
    %v76 = vld [vmem:[#allocation6 + $0x14] sm:$0xf]
    %v77 = vld [vmem:[#allocation6 + $0x18] sm:$0xf]
    %v78 = vld [vmem:[#allocation6 + $0x1c] sm:$0xf]
    %v79 = vld [vmem:[#allocation6 + $0x20] sm:$0xf]
    %v80 = vld [vmem:[#allocation6 + $0x24] sm:$0xf]
    %v81 = vld [vmem:[#allocation6 + $0x28] sm:$0xf]
    %v82 = vld [vmem:[#allocation6 + $0x2c] sm:$0xf]
    %v83 = vld [vmem:[#allocation6 + $0x30] sm:$0xf]
    %v84 = vld [vmem:[#allocation6 + $0x34] sm:$0xf]
    %v85 = vld [vmem:[#allocation6 + $0x38] sm:$0xf]
    %v86 = vld [vmem:[#allocation6 + $0x3c] sm:$0xf]
    %v87 = vld [vmem:[#allocation6 + $0x40] sm:$0xf]
    %v88 = vld [vmem:[#allocation6 + $0x44] sm:$0xf]
    %v89 = vld [vmem:[#allocation6 + $0x48] sm:$0xf]
    %v90 = vld [vmem:[#allocation6 + $0x4c] sm:$0xf]
    %v91 = vld [vmem:[#allocation6 + $0x50] sm:$0xf]
    %v92 = vld [vmem:[#allocation6 + $0x54] sm:$0xf]
    %v93 = vld [vmem:[#allocation6 + $0x58] sm:$0xf]
    %v94 = vld [vmem:[#allocation6 + $0x5c] sm:$0xf]
    %v95 = vld [vmem:[#allocation6 + $0x60] sm:$0xf]
    %v96 = vld [vmem:[#allocation6 + $0x64] sm:$0xf]
    %v97 = vld [vmem:[#allocation6 + $0x68] sm:$0xf]
    %v98 = vld [vmem:[#allocation6 + $0x6c] sm:$0xf]
    %v99 = vld [vmem:[#allocation6 + $0x70] sm:$0xf]
    %v100 = vld [vmem:[#allocation6 + $0x74] sm:$0xf]
    %v101 = vld [vmem:[#allocation6 + $0x78] sm:$0xf]
    %v102 = vld [vmem:[#allocation6 + $0x7c] sm:$0xf]
    %v135 = vunpack.c.l.b16 %v71
    %v136 = vunpack.c.l.b16 %v72
    %v137 = vunpack.c.l.b16 %v73
    %v138 = vunpack.c.l.b16 %v74
    %v139 = vunpack.c.l.b16 %v75
    %v140 = vunpack.c.l.b16 %v76
    %v141 = vunpack.c.l.b16 %v77
    %v142 = vunpack.c.l.b16 %v78
    %v143 = vunpack.c.l.b16 %v79
    %v144 = vunpack.c.l.b16 %v80
    %v145 = vunpack.c.l.b16 %v81
    %v146 = vunpack.c.l.b16 %v82
    %v147 = vunpack.c.l.b16 %v83
    %v148 = vunpack.c.l.b16 %v84
    %v149 = vunpack.c.l.b16 %v85
    %v150 = vunpack.c.l.b16 %v86
    %v151 = vunpack.c.l.b16 %v87
    %v152 = vunpack.c.l.b16 %v88
    %v153 = vunpack.c.l.b16 %v89
    %v154 = vunpack.c.l.b16 %v90
    %v155 = vunpack.c.l.b16 %v91
    %v156 = vunpack.c.l.b16 %v92
    %v157 = vunpack.c.l.b16 %v93
    %v158 = vunpack.c.l.b16 %v94
    %v159 = vunpack.c.l.b16 %v95
    %v160 = vunpack.c.l.b16 %v96
    %v161 = vunpack.c.l.b16 %v97
    %v162 = vunpack.c.l.b16 %v98
    %v163 = vunpack.c.l.b16 %v99
    %v164 = vunpack.c.l.b16 %v100
    %v165 = vunpack.c.l.b16 %v101
    %v166 = vunpack.c.l.b16 %v102
    %v167 = vpack.c.b16 %v136, %v135
    %v168 = vpack.c.b16 %v138, %v137
    %v169 = vpack.c.b16 %v140, %v139
    %v170 = vpack.c.b16 %v142, %v141
    %v171 = vpack.c.b16 %v144, %v143
    %v172 = vpack.c.b16 %v146, %v145
    %v173 = vpack.c.b16 %v148, %v147
    %v174 = vpack.c.b16 %v150, %v149
    %v175 = vpack.c.b16 %v152, %v151
    %v176 = vpack.c.b16 %v154, %v153
    %v177 = vpack.c.b16 %v156, %v155
    %v178 = vpack.c.b16 %v158, %v157
    %v179 = vpack.c.b16 %v160, %v159
    %v180 = vpack.c.b16 %v162, %v161
    %v181 = vpack.c.b16 %v164, %v163
    %v182 = vpack.c.b16 %v166, %v165
    %199 = vmatprep.subr.bf16.mxu0 0
    %200 = vmatpush1.bf16.msra.mxu0 %v167
    %201 = vmatprep.subr.bf16.mxu0 0
    %202 = vmatpush1.bf16.msra.mxu0 %v168
    %203 = vmatprep.subr.bf16.mxu0 0
    %204 = vmatpush1.bf16.msra.mxu0 %v169
    %205 = vmatprep.subr.bf16.mxu0 0
    %206 = vmatpush1.bf16.msra.mxu0 %v170
    %207 = vmatprep.subr.bf16.mxu0 0
    %208 = vmatpush1.bf16.msra.mxu0 %v171
    %209 = vmatprep.subr.bf16.mxu0 0
    %210 = vmatpush1.bf16.msra.mxu0 %v172
    %211 = vmatprep.subr.bf16.mxu0 0
    %212 = vmatpush1.bf16.msra.mxu0 %v173
    %213 = vmatprep.subr.bf16.mxu0 0
    %214 = vmatpush1.bf16.msra.mxu0 %v174
    %215 = vmatprep.subr.bf16.mxu0 0
    %216 = vmatpush1.bf16.msra.mxu0 %v175
    %217 = vmatprep.subr.bf16.mxu0 0
    %218 = vmatpush1.bf16.msra.mxu0 %v176
    %219 = vmatprep.subr.bf16.mxu0 0
    %220 = vmatpush1.bf16.msra.mxu0 %v177
    %221 = vmatprep.subr.bf16.mxu0 0
    %222 = vmatpush1.bf16.msra.mxu0 %v178
    %223 = vmatprep.subr.bf16.mxu0 0
    %224 = vmatpush1.bf16.msra.mxu0 %v179
    %225 = vmatprep.subr.bf16.mxu0 0
    %226 = vmatpush1.bf16.msra.mxu0 %v180
    %227 = vmatprep.subr.bf16.mxu0 0
    %228 = vmatpush1.bf16.msra.mxu0 %v181
    %229 = vmatprep.subr.bf16.mxu0 0
    %230 = vmatpush1.bf16.msra.mxu0 %v182
    %231 = vmatprep.mubr.bf16.mxu0 %v70
    %232 = vmatmul.mubr.bf16.gmra.mrb[0].mxu0 %v69
    %v233 = vpop.f32.mrb[0].mxu0
    %v234 = vadd.f32 0.0, %v233
    %v235 = vpop.f32.mrb[0].mxu0
    %v236 = vpop.f32.mrb[0].mxu0
    %v237 = vpop.f32.mrb[0].mxu0
    %238 = vdwg.mxu0
    %v239 = vadd.f32 %v68, %v234
    %v240 = vmul.f32 %v66, 0.9
    %v241 = vtanh.pop %v239
    %v242 = vmul.f32 %v241, 0.1
    %v243 = vadd.f32 %v240, %v242
    %v244 = vmul.f32 %v67, 0.1
    %v245 = vsub.f32 %v243, %v244
    %v246 = vmul.f32 %v245, 0.1
    %v247 = vadd.f32 %v67, %v246
    %248 = vst [vmem:[#allocation2] sm:$0xff] %v245
    %249 = vst [vmem:[#allocation2 + $0x8] sm:$0xff] %v247
    %v250 = vld [vmem:[#allocation2] sm:$0xff]
    %v251 = vld [vmem:[#allocation2 + $0x8] sm:$0xff]
    %s252 = scalar_lea.vmem [#allocation3], 8
    %v253 = vld [vmem:[%s252] sm:$0xff]
    %v254 = vpack.c.bf16 %v250, %v250
    %v255 = vpack.c.bf16 %v251, %v251
    %v256 = vld [vmem:[#allocation6] sm:$0xf]
    %v257 = vld [vmem:[#allocation6 + $0x4] sm:$0xf]
    %v258 = vld [vmem:[#allocation6 + $0x8] sm:$0xf]
    %v259 = vld [vmem:[#allocation6 + $0xc] sm:$0xf]
    %v260 = vld [vmem:[#allocation6 + $0x10] sm:$0xf]
    %v261 = vld [vmem:[#allocation6 + $0x14] sm:$0xf]
    %v262 = vld [vmem:[#allocation6 + $0x18] sm:$0xf]
    %v263 = vld [vmem:[#allocation6 + $0x1c] sm:$0xf]
    %v264 = vld [vmem:[#allocation6 + $0x20] sm:$0xf]
    %v265 = vld [vmem:[#allocation6 + $0x24] sm:$0xf]
    %v266 = vld [vmem:[#allocation6 + $0x28] sm:$0xf]
    %v267 = vld [vmem:[#allocation6 + $0x2c] sm:$0xf]
    %v268 = vld [vmem:[#allocation6 + $0x30] sm:$0xf]
    %v269 = vld [vmem:[#allocation6 + $0x34] sm:$0xf]
    %v270 = vld [vmem:[#allocation6 + $0x38] sm:$0xf]
    %v271 = vld [vmem:[#allocation6 + $0x3c] sm:$0xf]
    %v272 = vld [vmem:[#allocation6 + $0x40] sm:$0xf]
    %v273 = vld [vmem:[#allocation6 + $0x44] sm:$0xf]
    %v274 = vld [vmem:[#allocation6 + $0x48] sm:$0xf]
    %v275 = vld [vmem:[#allocation6 + $0x4c] sm:$0xf]
    %v276 = vld [vmem:[#allocation6 + $0x50] sm:$0xf]
    %v277 = vld [vmem:[#allocation6 + $0x54] sm:$0xf]
    %v278 = vld [vmem:[#allocation6 + $0x58] sm:$0xf]
    %v279 = vld [vmem:[#allocation6 + $0x5c] sm:$0xf]
    %v280 = vld [vmem:[#allocation6 + $0x60] sm:$0xf]
    %v281 = vld [vmem:[#allocation6 + $0x64] sm:$0xf]
    %v282 = vld [vmem:[#allocation6 + $0x68] sm:$0xf]
    %v283 = vld [vmem:[#allocation6 + $0x6c] sm:$0xf]
    %v284 = vld [vmem:[#allocation6 + $0x70] sm:$0xf]
    %v285 = vld [vmem:[#allocation6 + $0x74] sm:$0xf]
    %v286 = vld [vmem:[#allocation6 + $0x78] sm:$0xf]
    %v287 = vld [vmem:[#allocation6 + $0x7c] sm:$0xf]
    %v320 = vunpack.c.l.b16 %v256
    %v321 = vunpack.c.l.b16 %v257
    %v322 = vunpack.c.l.b16 %v258
    %v323 = vunpack.c.l.b16 %v259
    %v324 = vunpack.c.l.b16 %v260
    %v325 = vunpack.c.l.b16 %v261
    %v326 = vunpack.c.l.b16 %v262
    %v327 = vunpack.c.l.b16 %v263
    %v328 = vunpack.c.l.b16 %v264
    %v329 = vunpack.c.l.b16 %v265
    %v330 = vunpack.c.l.b16 %v266
    %v331 = vunpack.c.l.b16 %v267
    %v332 = vunpack.c.l.b16 %v268
    %v333 = vunpack.c.l.b16 %v269
    %v334 = vunpack.c.l.b16 %v270
    %v335 = vunpack.c.l.b16 %v271
    %v336 = vunpack.c.l.b16 %v272
    %v337 = vunpack.c.l.b16 %v273
    %v338 = vunpack.c.l.b16 %v274
    %v339 = vunpack.c.l.b16 %v275
    %v340 = vunpack.c.l.b16 %v276
    %v341 = vunpack.c.l.b16 %v277
    %v342 = vunpack.c.l.b16 %v278
    %v343 = vunpack.c.l.b16 %v279
    %v344 = vunpack.c.l.b16 %v280
    %v345 = vunpack.c.l.b16 %v281
    %v346 = vunpack.c.l.b16 %v282
    %v347 = vunpack.c.l.b16 %v283
    %v348 = vunpack.c.l.b16 %v284
    %v349 = vunpack.c.l.b16 %v285
    %v350 = vunpack.c.l.b16 %v286
    %v351 = vunpack.c.l.b16 %v287
    %v352 = vpack.c.b16 %v321, %v320
    %v353 = vpack.c.b16 %v323, %v322
    %v354 = vpack.c.b16 %v325, %v324
    %v355 = vpack.c.b16 %v327, %v326
    %v356 = vpack.c.b16 %v329, %v328
    %v357 = vpack.c.b16 %v331, %v330
    %v358 = vpack.c.b16 %v333, %v332
    %v359 = vpack.c.b16 %v335, %v334
    %v360 = vpack.c.b16 %v337, %v336
    %v361 = vpack.c.b16 %v339, %v338
    %v362 = vpack.c.b16 %v341, %v340
    %v363 = vpack.c.b16 %v343, %v342
    %v364 = vpack.c.b16 %v345, %v344
    %v365 = vpack.c.b16 %v347, %v346
    %v366 = vpack.c.b16 %v349, %v348
    %v367 = vpack.c.b16 %v351, %v350
    %384 = vmatprep.subr.bf16.mxu0 0
    %385 = vmatpush1.bf16.msra.mxu0 %v352
    %386 = vmatprep.subr.bf16.mxu0 0
    %387 = vmatpush1.bf16.msra.mxu0 %v353
    %388 = vmatprep.subr.bf16.mxu0 0
    %389 = vmatpush1.bf16.msra.mxu0 %v354
    %390 = vmatprep.subr.bf16.mxu0 0
    %391 = vmatpush1.bf16.msra.mxu0 %v355
    %392 = vmatprep.subr.bf16.mxu0 0
    %393 = vmatpush1.bf16.msra.mxu0 %v356
    %394 = vmatprep.subr.bf16.mxu0 0
    %395 = vmatpush1.bf16.msra.mxu0 %v357
    %396 = vmatprep.subr.bf16.mxu0 0
    %397 = vmatpush1.bf16.msra.mxu0 %v358
    %398 = vmatprep.subr.bf16.mxu0 0
    %399 = vmatpush1.bf16.msra.mxu0 %v359
    %400 = vmatprep.subr.bf16.mxu0 0
    %401 = vmatpush1.bf16.msra.mxu0 %v360
    %402 = vmatprep.subr.bf16.mxu0 0
    %403 = vmatpush1.bf16.msra.mxu0 %v361
    %404 = vmatprep.subr.bf16.mxu0 0
    %405 = vmatpush1.bf16.msra.mxu0 %v362
    %406 = vmatprep.subr.bf16.mxu0 0
    %407 = vmatpush1.bf16.msra.mxu0 %v363
    %408 = vmatprep.subr.bf16.mxu0 0
    %409 = vmatpush1.bf16.msra.mxu0 %v364
    %410 = vmatprep.subr.bf16.mxu0 0
    %411 = vmatpush1.bf16.msra.mxu0 %v365
    %412 = vmatprep.subr.bf16.mxu0 0
    %413 = vmatpush1.bf16.msra.mxu0 %v366
    %414 = vmatprep.subr.bf16.mxu0 0
    %415 = vmatpush1.bf16.msra.mxu0 %v367
    %416 = vmatprep.mubr.bf16.mxu0 %v255
    %417 = vmatmul.mubr.bf16.gmra.mrb[0].mxu0 %v254
    %v418 = vpop.f32.mrb[0].mxu0
    %v419 = vadd.f32 0.0, %v418
    %v420 = vpop.f32.mrb[0].mxu0
    %v421 = vpop.f32.mrb[0].mxu0
    %v422 = vpop.f32.mrb[0].mxu0
    %423 = vdwg.mxu0
    %v424 = vadd.f32 %v253, %v419
    %v425 = vmul.f32 %v250, 0.9
    %v426 = vtanh.pop %v424
    %v427 = vmul.f32 %v426, 0.1
    %v428 = vadd.f32 %v425, %v427
    %v429 = vmul.f32 %v251, 0.1
    %v430 = vsub.f32 %v428, %v429
    %v431 = vmul.f32 %v430, 0.1
    %v432 = vadd.f32 %v251, %v431
    %433 = vst [vmem:[#allocation2] sm:$0xff] %v430
    %434 = vst [vmem:[#allocation2 + $0x8] sm:$0xff] %v432
    %v435 = vld [vmem:[#allocation2] sm:$0xff]
    %v436 = vld [vmem:[#allocation2 + $0x8] sm:$0xff]
    %s437 = scalar_lea.vmem [#allocation3], 16
    %v438 = vld [vmem:[%s437] sm:$0xff]
    %v439 = vpack.c.bf16 %v435, %v435
    %v440 = vpack.c.bf16 %v436, %v436
    %v441 = vld [vmem:[#allocation6] sm:$0xf]
    %v442 = vld [vmem:[#allocation6 + $0x4] sm:$0xf]
    %v443 = vld [vmem:[#allocation6 + $0x8] sm:$0xf]
    %v444 = vld [vmem:[#allocation6 + $0xc] sm:$0xf]
    %v445 = vld [vmem:[#allocation6 + $0x10] sm:$0xf]
    %v446 = vld [vmem:[#allocation6 + $0x14] sm:$0xf]
    %v447 = vld [vmem:[#allocation6 + $0x18] sm:$0xf]
    %v448 = vld [vmem:[#allocation6 + $0x1c] sm:$0xf]
    %v449 = vld [vmem:[#allocation6 + $0x20] sm:$0xf]
    %v450 = vld [vmem:[#allocation6 + $0x24] sm:$0xf]
    %v451 = vld [vmem:[#allocation6 + $0x28] sm:$0xf]
    %v452 = vld [vmem:[#allocation6 + $0x2c] sm:$0xf]
    %v453 = vld [vmem:[#allocation6 + $0x30] sm:$0xf]
    %v454 = vld [vmem:[#allocation6 + $0x34] sm:$0xf]
    %v455 = vld [vmem:[#allocation6 + $0x38] sm:$0xf]
    %v456 = vld [vmem:[#allocation6 + $0x3c] sm:$0xf]
    %v457 = vld [vmem:[#allocation6 + $0x40] sm:$0xf]
    %v458 = vld [vmem:[#allocation6 + $0x44] sm:$0xf]
    %v459 = vld [vmem:[#allocation6 + $0x48] sm:$0xf]
    %v460 = vld [vmem:[#allocation6 + $0x4c] sm:$0xf]
    %v461 = vld [vmem:[#allocation6 + $0x50] sm:$0xf]
    %v462 = vld [vmem:[#allocation6 + $0x54] sm:$0xf]
    %v463 = vld [vmem:[#allocation6 + $0x58] sm:$0xf]
    %v464 = vld [vmem:[#allocation6 + $0x5c] sm:$0xf]
    %v465 = vld [vmem:[#allocation6 + $0x60] sm:$0xf]
    %v466 = vld [vmem:[#allocation6 + $0x64] sm:$0xf]
    %v467 = vld [vmem:[#allocation6 + $0x68] sm:$0xf]
    %v468 = vld [vmem:[#allocation6 + $0x6c] sm:$0xf]
    %v469 = vld [vmem:[#allocation6 + $0x70] sm:$0xf]
    %v470 = vld [vmem:[#allocation6 + $0x74] sm:$0xf]
    %v471 = vld [vmem:[#allocation6 + $0x78] sm:$0xf]
    %v472 = vld [vmem:[#allocation6 + $0x7c] sm:$0xf]
    %v505 = vunpack.c.l.b16 %v441
    %v506 = vunpack.c.l.b16 %v442
    %v507 = vunpack.c.l.b16 %v443
    %v508 = vunpack.c.l.b16 %v444
    %v509 = vunpack.c.l.b16 %v445
    %v510 = vunpack.c.l.b16 %v446
    %v511 = vunpack.c.l.b16 %v447
    %v512 = vunpack.c.l.b16 %v448
    %v513 = vunpack.c.l.b16 %v449
    %v514 = vunpack.c.l.b16 %v450
    %v515 = vunpack.c.l.b16 %v451
    %v516 = vunpack.c.l.b16 %v452
    %v517 = vunpack.c.l.b16 %v453
    %v518 = vunpack.c.l.b16 %v454
    %v519 = vunpack.c.l.b16 %v455
    %v520 = vunpack.c.l.b16 %v456
    %v521 = vunpack.c.l.b16 %v457
    %v522 = vunpack.c.l.b16 %v458
    %v523 = vunpack.c.l.b16 %v459
    %v524 = vunpack.c.l.b16 %v460
    %v525 = vunpack.c.l.b16 %v461
    %v526 = vunpack.c.l.b16 %v462
    %v527 = vunpack.c.l.b16 %v463
    %v528 = vunpack.c.l.b16 %v464
    %v529 = vunpack.c.l.b16 %v465
    %v530 = vunpack.c.l.b16 %v466
    %v531 = vunpack.c.l.b16 %v467
    %v532 = vunpack.c.l.b16 %v468
    %v533 = vunpack.c.l.b16 %v469
    %v534 = vunpack.c.l.b16 %v470
    %v535 = vunpack.c.l.b16 %v471
    %v536 = vunpack.c.l.b16 %v472
    %v537 = vpack.c.b16 %v506, %v505
    %v538 = vpack.c.b16 %v508, %v507
    %v539 = vpack.c.b16 %v510, %v509
    %v540 = vpack.c.b16 %v512, %v511
    %v541 = vpack.c.b16 %v514, %v513
    %v542 = vpack.c.b16 %v516, %v515
    %v543 = vpack.c.b16 %v518, %v517
    %v544 = vpack.c.b16 %v520, %v519
    %v545 = vpack.c.b16 %v522, %v521
    %v546 = vpack.c.b16 %v524, %v523
    %v547 = vpack.c.b16 %v526, %v525
    %v548 = vpack.c.b16 %v528, %v527
    %v549 = vpack.c.b16 %v530, %v529
    %v550 = vpack.c.b16 %v532, %v531
    %v551 = vpack.c.b16 %v534, %v533
    %v552 = vpack.c.b16 %v536, %v535
    %569 = vmatprep.subr.bf16.mxu0 0
    %570 = vmatpush1.bf16.msra.mxu0 %v537
    %571 = vmatprep.subr.bf16.mxu0 0
    %572 = vmatpush1.bf16.msra.mxu0 %v538
    %573 = vmatprep.subr.bf16.mxu0 0
    %574 = vmatpush1.bf16.msra.mxu0 %v539
    %575 = vmatprep.subr.bf16.mxu0 0
    %576 = vmatpush1.bf16.msra.mxu0 %v540
    %577 = vmatprep.subr.bf16.mxu0 0
    %578 = vmatpush1.bf16.msra.mxu0 %v541
    %579 = vmatprep.subr.bf16.mxu0 0
    %580 = vmatpush1.bf16.msra.mxu0 %v542
    %581 = vmatprep.subr.bf16.mxu0 0
    %582 = vmatpush1.bf16.msra.mxu0 %v543
    %583 = vmatprep.subr.bf16.mxu0 0
    %584 = vmatpush1.bf16.msra.mxu0 %v544
    %585 = vmatprep.subr.bf16.mxu0 0
    %586 = vmatpush1.bf16.msra.mxu0 %v545
    %587 = vmatprep.subr.bf16.mxu0 0
    %588 = vmatpush1.bf16.msra.mxu0 %v546
    %589 = vmatprep.subr.bf16.mxu0 0
    %590 = vmatpush1.bf16.msra.mxu0 %v547
    %591 = vmatprep.subr.bf16.mxu0 0
    %592 = vmatpush1.bf16.msra.mxu0 %v548
    %593 = vmatprep.subr.bf16.mxu0 0
    %594 = vmatpush1.bf16.msra.mxu0 %v549
    %595 = vmatprep.subr.bf16.mxu0 0
    %596 = vmatpush1.bf16.msra.mxu0 %v550
    %597 = vmatprep.subr.bf16.mxu0 0
    %598 = vmatpush1.bf16.msra.mxu0 %v551
    %599 = vmatprep.subr.bf16.mxu0 0
    %600 = vmatpush1.bf16.msra.mxu0 %v552
    %601 = vmatprep.mubr.bf16.mxu0 %v440
    %602 = vmatmul.mubr.bf16.gmra.mrb[0].mxu0 %v439
    %v603 = vpop.f32.mrb[0].mxu0
    %v604 = vadd.f32 0.0, %v603
    %v605 = vpop.f32.mrb[0].mxu0
    %v606 = vpop.f32.mrb[0].mxu0
    %v607 = vpop.f32.mrb[0].mxu0
    %608 = vdwg.mxu0
    %v609 = vadd.f32 %v438, %v604
    %v610 = vmul.f32 %v435, 0.9
    %v611 = vtanh.pop %v609
    %v612 = vmul.f32 %v611, 0.1
    %v613 = vadd.f32 %v610, %v612
    %v614 = vmul.f32 %v436, 0.1
    %v615 = vsub.f32 %v613, %v614
    %v616 = vmul.f32 %v615, 0.1
    %v617 = vadd.f32 %v436, %v616
    %618 = vst [vmem:[#allocation2] sm:$0xff] %v615
    %619 = vst [vmem:[#allocation2 + $0x8] sm:$0xff] %v617
    %v620 = vld [vmem:[#allocation2] sm:$0xff]
    %v621 = vld [vmem:[#allocation2 + $0x8] sm:$0xff]
    %s622 = scalar_lea.vmem [#allocation3], 24
    %v623 = vld [vmem:[%s622] sm:$0xff]
    %v624 = vpack.c.bf16 %v620, %v620
    %v625 = vpack.c.bf16 %v621, %v621
    %v626 = vld [vmem:[#allocation6] sm:$0xf]
    %v627 = vld [vmem:[#allocation6 + $0x4] sm:$0xf]
    %v628 = vld [vmem:[#allocation6 + $0x8] sm:$0xf]
    %v629 = vld [vmem:[#allocation6 + $0xc] sm:$0xf]
    %v630 = vld [vmem:[#allocation6 + $0x10] sm:$0xf]
    %v631 = vld [vmem:[#allocation6 + $0x14] sm:$0xf]
    %v632 = vld [vmem:[#allocation6 + $0x18] sm:$0xf]
    %v633 = vld [vmem:[#allocation6 + $0x1c] sm:$0xf]
    %v634 = vld [vmem:[#allocation6 + $0x20] sm:$0xf]
    %v635 = vld [vmem:[#allocation6 + $0x24] sm:$0xf]
    %v636 = vld [vmem:[#allocation6 + $0x28] sm:$0xf]
    %v637 = vld [vmem:[#allocation6 + $0x2c] sm:$0xf]
    %v638 = vld [vmem:[#allocation6 + $0x30] sm:$0xf]
    %v639 = vld [vmem:[#allocation6 + $0x34] sm:$0xf]
    %v640 = vld [vmem:[#allocation6 + $0x38] sm:$0xf]
    %v641 = vld [vmem:[#allocation6 + $0x3c] sm:$0xf]
    %v642 = vld [vmem:[#allocation6 + $0x40] sm:$0xf]
    %v643 = vld [vmem:[#allocation6 + $0x44] sm:$0xf]
    %v644 = vld [vmem:[#allocation6 + $0x48] sm:$0xf]
    %v645 = vld [vmem:[#allocation6 + $0x4c] sm:$0xf]
    %v646 = vld [vmem:[#allocation6 + $0x50] sm:$0xf]
    %v647 = vld [vmem:[#allocation6 + $0x54] sm:$0xf]
    %v648 = vld [vmem:[#allocation6 + $0x58] sm:$0xf]
    %v649 = vld [vmem:[#allocation6 + $0x5c] sm:$0xf]
    %v650 = vld [vmem:[#allocation6 + $0x60] sm:$0xf]
    %v651 = vld [vmem:[#allocation6 + $0x64] sm:$0xf]
    %v652 = vld [vmem:[#allocation6 + $0x68] sm:$0xf]
    %v653 = vld [vmem:[#allocation6 + $0x6c] sm:$0xf]
    %v654 = vld [vmem:[#allocation6 + $0x70] sm:$0xf]
    %v655 = vld [vmem:[#allocation6 + $0x74] sm:$0xf]
    %v656 = vld [vmem:[#allocation6 + $0x78] sm:$0xf]
    %v657 = vld [vmem:[#allocation6 + $0x7c] sm:$0xf]
    %v690 = vunpack.c.l.b16 %v626
    %v691 = vunpack.c.l.b16 %v627
    %v692 = vunpack.c.l.b16 %v628
    %v693 = vunpack.c.l.b16 %v629
    %v694 = vunpack.c.l.b16 %v630
    %v695 = vunpack.c.l.b16 %v631
    %v696 = vunpack.c.l.b16 %v632
    %v697 = vunpack.c.l.b16 %v633
    %v698 = vunpack.c.l.b16 %v634
    %v699 = vunpack.c.l.b16 %v635
    %v700 = vunpack.c.l.b16 %v636
    %v701 = vunpack.c.l.b16 %v637
    %v702 = vunpack.c.l.b16 %v638
    %v703 = vunpack.c.l.b16 %v639
    %v704 = vunpack.c.l.b16 %v640
    %v705 = vunpack.c.l.b16 %v641
    %v706 = vunpack.c.l.b16 %v642
    %v707 = vunpack.c.l.b16 %v643
    %v708 = vunpack.c.l.b16 %v644
    %v709 = vunpack.c.l.b16 %v645
    %v710 = vunpack.c.l.b16 %v646
    %v711 = vunpack.c.l.b16 %v647
    %v712 = vunpack.c.l.b16 %v648
    %v713 = vunpack.c.l.b16 %v649
    %v714 = vunpack.c.l.b16 %v650
    %v715 = vunpack.c.l.b16 %v651
    %v716 = vunpack.c.l.b16 %v652
    %v717 = vunpack.c.l.b16 %v653
    %v718 = vunpack.c.l.b16 %v654
    %v719 = vunpack.c.l.b16 %v655
    %v720 = vunpack.c.l.b16 %v656
    %v721 = vunpack.c.l.b16 %v657
    %v722 = vpack.c.b16 %v691, %v690
    %v723 = vpack.c.b16 %v693, %v692
    %v724 = vpack.c.b16 %v695, %v694
    %v725 = vpack.c.b16 %v697, %v696
    %v726 = vpack.c.b16 %v699, %v698
    %v727 = vpack.c.b16 %v701, %v700
    %v728 = vpack.c.b16 %v703, %v702
    %v729 = vpack.c.b16 %v705, %v704
    %v730 = vpack.c.b16 %v707, %v706
    %v731 = vpack.c.b16 %v709, %v708
    %v732 = vpack.c.b16 %v711, %v710
    %v733 = vpack.c.b16 %v713, %v712
    %v734 = vpack.c.b16 %v715, %v714
    %v735 = vpack.c.b16 %v717, %v716
    %v736 = vpack.c.b16 %v719, %v718
    %v737 = vpack.c.b16 %v721, %v720
    %754 = vmatprep.subr.bf16.mxu0 0
    %755 = vmatpush1.bf16.msra.mxu0 %v722
    %756 = vmatprep.subr.bf16.mxu0 0
    %757 = vmatpush1.bf16.msra.mxu0 %v723
    %758 = vmatprep.subr.bf16.mxu0 0
    %759 = vmatpush1.bf16.msra.mxu0 %v724
    %760 = vmatprep.subr.bf16.mxu0 0
    %761 = vmatpush1.bf16.msra.mxu0 %v725
    %762 = vmatprep.subr.bf16.mxu0 0
    %763 = vmatpush1.bf16.msra.mxu0 %v726
    %764 = vmatprep.subr.bf16.mxu0 0
    %765 = vmatpush1.bf16.msra.mxu0 %v727
    %766 = vmatprep.subr.bf16.mxu0 0
    %767 = vmatpush1.bf16.msra.mxu0 %v728
    %768 = vmatprep.subr.bf16.mxu0 0
    %769 = vmatpush1.bf16.msra.mxu0 %v729
    %770 = vmatprep.subr.bf16.mxu0 0
    %771 = vmatpush1.bf16.msra.mxu0 %v730
    %772 = vmatprep.subr.bf16.mxu0 0
    %773 = vmatpush1.bf16.msra.mxu0 %v731
    %774 = vmatprep.subr.bf16.mxu0 0
    %775 = vmatpush1.bf16.msra.mxu0 %v732
    %776 = vmatprep.subr.bf16.mxu0 0
    %777 = vmatpush1.bf16.msra.mxu0 %v733
    %778 = vmatprep.subr.bf16.mxu0 0
    %779 = vmatpush1.bf16.msra.mxu0 %v734
    %780 = vmatprep.subr.bf16.mxu0 0
    %781 = vmatpush1.bf16.msra.mxu0 %v735
    %782 = vmatprep.subr.bf16.mxu0 0
    %783 = vmatpush1.bf16.msra.mxu0 %v736
    %784 = vmatprep.subr.bf16.mxu0 0
    %785 = vmatpush1.bf16.msra.mxu0 %v737
    %786 = vmatprep.mubr.bf16.mxu0 %v625
    %787 = vmatmul.mubr.bf16.gmra.mrb[0].mxu0 %v624
    %v788 = vpop.f32.mrb[0].mxu0
    %v789 = vadd.f32 0.0, %v788
    %v790 = vpop.f32.mrb[0].mxu0
    %v791 = vpop.f32.mrb[0].mxu0
    %v792 = vpop.f32.mrb[0].mxu0
    %793 = vdwg.mxu0
    %v794 = vadd.f32 %v623, %v789
    %v795 = vmul.f32 %v620, 0.9
    %v796 = vtanh.pop %v794
    %v797 = vmul.f32 %v796, 0.1
    %v798 = vadd.f32 %v795, %v797
    %v799 = vmul.f32 %v621, 0.1
    %v800 = vsub.f32 %v798, %v799
    %v801 = vmul.f32 %v800, 0.1
    %v802 = vadd.f32 %v621, %v801
    %803 = vst [vmem:[#allocation2] sm:$0xff] %v800
    %804 = vst [vmem:[#allocation2 + $0x8] sm:$0xff] %v802
    %v805 = vld [vmem:[#allocation2] sm:$0xff]
    %v806 = vld [vmem:[#allocation2 + $0x8] sm:$0xff]
    %s807 = scalar_lea.vmem [#allocation3], 32
    %v808 = vld [vmem:[%s807] sm:$0xff]
    %v809 = vpack.c.bf16 %v805, %v805
    %v810 = vpack.c.bf16 %v806, %v806
    %v811 = vld [vmem:[#allocation6] sm:$0xf]
    %v812 = vld [vmem:[#allocation6 + $0x4] sm:$0xf]
    %v813 = vld [vmem:[#allocation6 + $0x8] sm:$0xf]
    %v814 = vld [vmem:[#allocation6 + $0xc] sm:$0xf]
    %v815 = vld [vmem:[#allocation6 + $0x10] sm:$0xf]
    %v816 = vld [vmem:[#allocation6 + $0x14] sm:$0xf]
    %v817 = vld [vmem:[#allocation6 + $0x18] sm:$0xf]
    %v818 = vld [vmem:[#allocation6 + $0x1c] sm:$0xf]
    %v819 = vld [vmem:[#allocation6 + $0x20] sm:$0xf]
    %v820 = vld [vmem:[#allocation6 + $0x24] sm:$0xf]
    %v821 = vld [vmem:[#allocation6 + $0x28] sm:$0xf]
    %v822 = vld [vmem:[#allocation6 + $0x2c] sm:$0xf]
    %v823 = vld [vmem:[#allocation6 + $0x30] sm:$0xf]
    %v824 = vld [vmem:[#allocation6 + $0x34] sm:$0xf]
    %v825 = vld [vmem:[#allocation6 + $0x38] sm:$0xf]
    %v826 = vld [vmem:[#allocation6 + $0x3c] sm:$0xf]
    %v827 = vld [vmem:[#allocation6 + $0x40] sm:$0xf]
    %v828 = vld [vmem:[#allocation6 + $0x44] sm:$0xf]
    %v829 = vld [vmem:[#allocation6 + $0x48] sm:$0xf]
    %v830 = vld [vmem:[#allocation6 + $0x4c] sm:$0xf]
    %v831 = vld [vmem:[#allocation6 + $0x50] sm:$0xf]
    %v832 = vld [vmem:[#allocation6 + $0x54] sm:$0xf]
    %v833 = vld [vmem:[#allocation6 + $0x58] sm:$0xf]
    %v834 = vld [vmem:[#allocation6 + $0x5c] sm:$0xf]
    %v835 = vld [vmem:[#allocation6 + $0x60] sm:$0xf]
    %v836 = vld [vmem:[#allocation6 + $0x64] sm:$0xf]
    %v837 = vld [vmem:[#allocation6 + $0x68] sm:$0xf]
    %v838 = vld [vmem:[#allocation6 + $0x6c] sm:$0xf]
    %v839 = vld [vmem:[#allocation6 + $0x70] sm:$0xf]
    %v840 = vld [vmem:[#allocation6 + $0x74] sm:$0xf]
    %v841 = vld [vmem:[#allocation6 + $0x78] sm:$0xf]
    %v842 = vld [vmem:[#allocation6 + $0x7c] sm:$0xf]
    %v875 = vunpack.c.l.b16 %v811
    %v876 = vunpack.c.l.b16 %v812
    %v877 = vunpack.c.l.b16 %v813
    %v878 = vunpack.c.l.b16 %v814
    %v879 = vunpack.c.l.b16 %v815
    %v880 = vunpack.c.l.b16 %v816
    %v881 = vunpack.c.l.b16 %v817
    %v882 = vunpack.c.l.b16 %v818
    %v883 = vunpack.c.l.b16 %v819
    %v884 = vunpack.c.l.b16 %v820
    %v885 = vunpack.c.l.b16 %v821
    %v886 = vunpack.c.l.b16 %v822
    %v887 = vunpack.c.l.b16 %v823
    %v888 = vunpack.c.l.b16 %v824
    %v889 = vunpack.c.l.b16 %v825
    %v890 = vunpack.c.l.b16 %v826
    %v891 = vunpack.c.l.b16 %v827
    %v892 = vunpack.c.l.b16 %v828
    %v893 = vunpack.c.l.b16 %v829
    %v894 = vunpack.c.l.b16 %v830
    %v895 = vunpack.c.l.b16 %v831
    %v896 = vunpack.c.l.b16 %v832
    %v897 = vunpack.c.l.b16 %v833
    %v898 = vunpack.c.l.b16 %v834
    %v899 = vunpack.c.l.b16 %v835
    %v900 = vunpack.c.l.b16 %v836
    %v901 = vunpack.c.l.b16 %v837
    %v902 = vunpack.c.l.b16 %v838
    %v903 = vunpack.c.l.b16 %v839
    %v904 = vunpack.c.l.b16 %v840
    %v905 = vunpack.c.l.b16 %v841
    %v906 = vunpack.c.l.b16 %v842
    %v907 = vpack.c.b16 %v876, %v875
    %v908 = vpack.c.b16 %v878, %v877
    %v909 = vpack.c.b16 %v880, %v879
    %v910 = vpack.c.b16 %v882, %v881
    %v911 = vpack.c.b16 %v884, %v883
    %v912 = vpack.c.b16 %v886, %v885
    %v913 = vpack.c.b16 %v888, %v887
    %v914 = vpack.c.b16 %v890, %v889
    %v915 = vpack.c.b16 %v892, %v891
    %v916 = vpack.c.b16 %v894, %v893
    %v917 = vpack.c.b16 %v896, %v895
    %v918 = vpack.c.b16 %v898, %v897
    %v919 = vpack.c.b16 %v900, %v899
    %v920 = vpack.c.b16 %v902, %v901
    %v921 = vpack.c.b16 %v904, %v903
    %v922 = vpack.c.b16 %v906, %v905
    %939 = vmatprep.subr.bf16.mxu0 0
    %940 = vmatpush1.bf16.msra.mxu0 %v907
    %941 = vmatprep.subr.bf16.mxu0 0
    %942 = vmatpush1.bf16.msra.mxu0 %v908
    %943 = vmatprep.subr.bf16.mxu0 0
    %944 = vmatpush1.bf16.msra.mxu0 %v909
    %945 = vmatprep.subr.bf16.mxu0 0
    %946 = vmatpush1.bf16.msra.mxu0 %v910
    %947 = vmatprep.subr.bf16.mxu0 0
    %948 = vmatpush1.bf16.msra.mxu0 %v911
    %949 = vmatprep.subr.bf16.mxu0 0
    %950 = vmatpush1.bf16.msra.mxu0 %v912
    %951 = vmatprep.subr.bf16.mxu0 0
    %952 = vmatpush1.bf16.msra.mxu0 %v913
    %953 = vmatprep.subr.bf16.mxu0 0
    %954 = vmatpush1.bf16.msra.mxu0 %v914
    %955 = vmatprep.subr.bf16.mxu0 0
    %956 = vmatpush1.bf16.msra.mxu0 %v915
    %957 = vmatprep.subr.bf16.mxu0 0
    %958 = vmatpush1.bf16.msra.mxu0 %v916
    %959 = vmatprep.subr.bf16.mxu0 0
    %960 = vmatpush1.bf16.msra.mxu0 %v917
    %961 = vmatprep.subr.bf16.mxu0 0
    %962 = vmatpush1.bf16.msra.mxu0 %v918
    %963 = vmatprep.subr.bf16.mxu0 0
    %964 = vmatpush1.bf16.msra.mxu0 %v919
    %965 = vmatprep.subr.bf16.mxu0 0
    %966 = vmatpush1.bf16.msra.mxu0 %v920
    %967 = vmatprep.subr.bf16.mxu0 0
    %968 = vmatpush1.bf16.msra.mxu0 %v921
    %969 = vmatprep.subr.bf16.mxu0 0
    %970 = vmatpush1.bf16.msra.mxu0 %v922
    %971 = vmatprep.mubr.bf16.mxu0 %v810
    %972 = vmatmul.mubr.bf16.gmra.mrb[0].mxu0 %v809
    %v973 = vpop.f32.mrb[0].mxu0
    %v974 = vadd.f32 0.0, %v973
    %v975 = vpop.f32.mrb[0].mxu0
    %v976 = vpop.f32.mrb[0].mxu0
    %v977 = vpop.f32.mrb[0].mxu0
    %978 = vdwg.mxu0
    %v979 = vadd.f32 %v808, %v974
    %v980 = vmul.f32 %v805, 0.9
    %v981 = vtanh.pop %v979
    %v982 = vmul.f32 %v981, 0.1
    %v983 = vadd.f32 %v980, %v982
    %v984 = vmul.f32 %v806, 0.1
    %v985 = vsub.f32 %v983, %v984
    %v986 = vmul.f32 %v985, 0.1
    %v987 = vadd.f32 %v806, %v986
    %988 = vst [vmem:[#allocation2] sm:$0xff] %v985
    %989 = vst [vmem:[#allocation2 + $0x8] sm:$0xff] %v987
    %v990 = vld [vmem:[#allocation2] sm:$0xff]
    %v991 = vld [vmem:[#allocation2 + $0x8] sm:$0xff]
    %s992 = scalar_lea.vmem [#allocation3], 40
    %v993 = vld [vmem:[%s992] sm:$0xff]
    %v994 = vpack.c.bf16 %v990, %v990
    %v995 = vpack.c.bf16 %v991, %v991
    %v996 = vld [vmem:[#allocation6] sm:$0xf]
    %v997 = vld [vmem:[#allocation6 + $0x4] sm:$0xf]
    %v998 = vld [vmem:[#allocation6 + $0x8] sm:$0xf]
    %v999 = vld [vmem:[#allocation6 + $0xc] sm:$0xf]
    %v1000 = vld [vmem:[#allocation6 + $0x10] sm:$0xf]
    %v1001 = vld [vmem:[#allocation6 + $0x14] sm:$0xf]
    %v1002 = vld [vmem:[#allocation6 + $0x18] sm:$0xf]
    %v1003 = vld [vmem:[#allocation6 + $0x1c] sm:$0xf]
    %v1004 = vld [vmem:[#allocation6 + $0x20] sm:$0xf]
    %v1005 = vld [vmem:[#allocation6 + $0x24] sm:$0xf]
    %v1006 = vld [vmem:[#allocation6 + $0x28] sm:$0xf]
    %v1007 = vld [vmem:[#allocation6 + $0x2c] sm:$0xf]
    %v1008 = vld [vmem:[#allocation6 + $0x30] sm:$0xf]
    %v1009 = vld [vmem:[#allocation6 + $0x34] sm:$0xf]
    %v1010 = vld [vmem:[#allocation6 + $0x38] sm:$0xf]
    %v1011 = vld [vmem:[#allocation6 + $0x3c] sm:$0xf]
    %v1012 = vld [vmem:[#allocation6 + $0x40] sm:$0xf]
    %v1013 = vld [vmem:[#allocation6 + $0x44] sm:$0xf]
    %v1014 = vld [vmem:[#allocation6 + $0x48] sm:$0xf]
    %v1015 = vld [vmem:[#allocation6 + $0x4c] sm:$0xf]
    %v1016 = vld [vmem:[#allocation6 + $0x50] sm:$0xf]
    %v1017 = vld [vmem:[#allocation6 + $0x54] sm:$0xf]
    %v1018 = vld [vmem:[#allocation6 + $0x58] sm:$0xf]
    %v1019 = vld [vmem:[#allocation6 + $0x5c] sm:$0xf]
    %v1020 = vld [vmem:[#allocation6 + $0x60] sm:$0xf]
    %v1021 = vld [vmem:[#allocation6 + $0x64] sm:$0xf]
    %v1022 = vld [vmem:[#allocation6 + $0x68] sm:$0xf]
    %v1023 = vld [vmem:[#allocation6 + $0x6c] sm:$0xf]
    %v1024 = vld [vmem:[#allocation6 + $0x70] sm:$0xf]
    %v1025 = vld [vmem:[#allocation6 + $0x74] sm:$0xf]
    %v1026 = vld [vmem:[#allocation6 + $0x78] sm:$0xf]
    %v1027 = vld [vmem:[#allocation6 + $0x7c] sm:$0xf]
    %v1060 = vunpack.c.l.b16 %v996
    %v1061 = vunpack.c.l.b16 %v997
    %v1062 = vunpack.c.l.b16 %v998
    %v1063 = vunpack.c.l.b16 %v999
    %v1064 = vunpack.c.l.b16 %v1000
    %v1065 = vunpack.c.l.b16 %v1001
    %v1066 = vunpack.c.l.b16 %v1002
    %v1067 = vunpack.c.l.b16 %v1003
    %v1068 = vunpack.c.l.b16 %v1004
    %v1069 = vunpack.c.l.b16 %v1005
    %v1070 = vunpack.c.l.b16 %v1006
    %v1071 = vunpack.c.l.b16 %v1007
    %v1072 = vunpack.c.l.b16 %v1008
    %v1073 = vunpack.c.l.b16 %v1009
    %v1074 = vunpack.c.l.b16 %v1010
    %v1075 = vunpack.c.l.b16 %v1011
    %v1076 = vunpack.c.l.b16 %v1012
    %v1077 = vunpack.c.l.b16 %v1013
    %v1078 = vunpack.c.l.b16 %v1014
    %v1079 = vunpack.c.l.b16 %v1015
    %v1080 = vunpack.c.l.b16 %v1016
    %v1081 = vunpack.c.l.b16 %v1017
    %v1082 = vunpack.c.l.b16 %v1018
    %v1083 = vunpack.c.l.b16 %v1019
    %v1084 = vunpack.c.l.b16 %v1020
    %v1085 = vunpack.c.l.b16 %v1021
    %v1086 = vunpack.c.l.b16 %v1022
    %v1087 = vunpack.c.l.b16 %v1023
    %v1088 = vunpack.c.l.b16 %v1024
    %v1089 = vunpack.c.l.b16 %v1025
    %v1090 = vunpack.c.l.b16 %v1026
    %v1091 = vunpack.c.l.b16 %v1027
    %v1092 = vpack.c.b16 %v1061, %v1060
    %v1093 = vpack.c.b16 %v1063, %v1062
    %v1094 = vpack.c.b16 %v1065, %v1064
    %v1095 = vpack.c.b16 %v1067, %v1066
    %v1096 = vpack.c.b16 %v1069, %v1068
    %v1097 = vpack.c.b16 %v1071, %v1070
    %v1098 = vpack.c.b16 %v1073, %v1072
    %v1099 = vpack.c.b16 %v1075, %v1074
    %v1100 = vpack.c.b16 %v1077, %v1076
    %v1101 = vpack.c.b16 %v1079, %v1078
    %v1102 = vpack.c.b16 %v1081, %v1080
    %v1103 = vpack.c.b16 %v1083, %v1082
    %v1104 = vpack.c.b16 %v1085, %v1084
    %v1105 = vpack.c.b16 %v1087, %v1086
    %v1106 = vpack.c.b16 %v1089, %v1088
    %v1107 = vpack.c.b16 %v1091, %v1090
    %1124 = vmatprep.subr.bf16.mxu0 0
    %1125 = vmatpush1.bf16.msra.mxu0 %v1092
    %1126 = vmatprep.subr.bf16.mxu0 0
    %1127 = vmatpush1.bf16.msra.mxu0 %v1093
    %1128 = vmatprep.subr.bf16.mxu0 0
    %1129 = vmatpush1.bf16.msra.mxu0 %v1094
    %1130 = vmatprep.subr.bf16.mxu0 0
    %1131 = vmatpush1.bf16.msra.mxu0 %v1095
    %1132 = vmatprep.subr.bf16.mxu0 0
    %1133 = vmatpush1.bf16.msra.mxu0 %v1096
    %1134 = vmatprep.subr.bf16.mxu0 0
    %1135 = vmatpush1.bf16.msra.mxu0 %v1097
    %1136 = vmatprep.subr.bf16.mxu0 0
    %1137 = vmatpush1.bf16.msra.mxu0 %v1098
    %1138 = vmatprep.subr.bf16.mxu0 0
    %1139 = vmatpush1.bf16.msra.mxu0 %v1099
    %1140 = vmatprep.subr.bf16.mxu0 0
    %1141 = vmatpush1.bf16.msra.mxu0 %v1100
    %1142 = vmatprep.subr.bf16.mxu0 0
    %1143 = vmatpush1.bf16.msra.mxu0 %v1101
    %1144 = vmatprep.subr.bf16.mxu0 0
    %1145 = vmatpush1.bf16.msra.mxu0 %v1102
    %1146 = vmatprep.subr.bf16.mxu0 0
    %1147 = vmatpush1.bf16.msra.mxu0 %v1103
    %1148 = vmatprep.subr.bf16.mxu0 0
    %1149 = vmatpush1.bf16.msra.mxu0 %v1104
    %1150 = vmatprep.subr.bf16.mxu0 0
    %1151 = vmatpush1.bf16.msra.mxu0 %v1105
    %1152 = vmatprep.subr.bf16.mxu0 0
    %1153 = vmatpush1.bf16.msra.mxu0 %v1106
    %1154 = vmatprep.subr.bf16.mxu0 0
    %1155 = vmatpush1.bf16.msra.mxu0 %v1107
    %1156 = vmatprep.mubr.bf16.mxu0 %v995
    %1157 = vmatmul.mubr.bf16.gmra.mrb[0].mxu0 %v994
    %v1158 = vpop.f32.mrb[0].mxu0
    %v1159 = vadd.f32 0.0, %v1158
    %v1160 = vpop.f32.mrb[0].mxu0
    %v1161 = vpop.f32.mrb[0].mxu0
    %v1162 = vpop.f32.mrb[0].mxu0
    %1163 = vdwg.mxu0
    %v1164 = vadd.f32 %v993, %v1159
    %v1165 = vmul.f32 %v990, 0.9
    %v1166 = vtanh.pop %v1164
    %v1167 = vmul.f32 %v1166, 0.1
    %v1168 = vadd.f32 %v1165, %v1167
    %v1169 = vmul.f32 %v991, 0.1
    %v1170 = vsub.f32 %v1168, %v1169
    %v1171 = vmul.f32 %v1170, 0.1
    %v1172 = vadd.f32 %v991, %v1171
    %1173 = vst [vmem:[#allocation2] sm:$0xff] %v1170
    %1174 = vst [vmem:[#allocation2 + $0x8] sm:$0xff] %v1172
    %v1175 = vld [vmem:[#allocation2] sm:$0xff]
    %v1176 = vld [vmem:[#allocation2 + $0x8] sm:$0xff]
    %s1177 = scalar_lea.vmem [#allocation3], 48
    %v1178 = vld [vmem:[%s1177] sm:$0xff]
    %v1179 = vpack.c.bf16 %v1175, %v1175
    %v1180 = vpack.c.bf16 %v1176, %v1176
    %v1181 = vld [vmem:[#allocation6] sm:$0xf]
    %v1182 = vld [vmem:[#allocation6 + $0x4] sm:$0xf]
    %v1183 = vld [vmem:[#allocation6 + $0x8] sm:$0xf]
    %v1184 = vld [vmem:[#allocation6 + $0xc] sm:$0xf]
    %v1185 = vld [vmem:[#allocation6 + $0x10] sm:$0xf]
    %v1186 = vld [vmem:[#allocation6 + $0x14] sm:$0xf]
    %v1187 = vld [vmem:[#allocation6 + $0x18] sm:$0xf]
    %v1188 = vld [vmem:[#allocation6 + $0x1c] sm:$0xf]
    %v1189 = vld [vmem:[#allocation6 + $0x20] sm:$0xf]
    %v1190 = vld [vmem:[#allocation6 + $0x24] sm:$0xf]
    %v1191 = vld [vmem:[#allocation6 + $0x28] sm:$0xf]
    %v1192 = vld [vmem:[#allocation6 + $0x2c] sm:$0xf]
    %v1193 = vld [vmem:[#allocation6 + $0x30] sm:$0xf]
    %v1194 = vld [vmem:[#allocation6 + $0x34] sm:$0xf]
    %v1195 = vld [vmem:[#allocation6 + $0x38] sm:$0xf]
    %v1196 = vld [vmem:[#allocation6 + $0x3c] sm:$0xf]
    %v1197 = vld [vmem:[#allocation6 + $0x40] sm:$0xf]
    %v1198 = vld [vmem:[#allocation6 + $0x44] sm:$0xf]
    %v1199 = vld [vmem:[#allocation6 + $0x48] sm:$0xf]
    %v1200 = vld [vmem:[#allocation6 + $0x4c] sm:$0xf]
    %v1201 = vld [vmem:[#allocation6 + $0x50] sm:$0xf]
    %v1202 = vld [vmem:[#allocation6 + $0x54] sm:$0xf]
    %v1203 = vld [vmem:[#allocation6 + $0x58] sm:$0xf]
    %v1204 = vld [vmem:[#allocation6 + $0x5c] sm:$0xf]
    %v1205 = vld [vmem:[#allocation6 + $0x60] sm:$0xf]
    %v1206 = vld [vmem:[#allocation6 + $0x64] sm:$0xf]
    %v1207 = vld [vmem:[#allocation6 + $0x68] sm:$0xf]
    %v1208 = vld [vmem:[#allocation6 + $0x6c] sm:$0xf]
    %v1209 = vld [vmem:[#allocation6 + $0x70] sm:$0xf]
    %v1210 = vld [vmem:[#allocation6 + $0x74] sm:$0xf]
    %v1211 = vld [vmem:[#allocation6 + $0x78] sm:$0xf]
    %v1212 = vld [vmem:[#allocation6 + $0x7c] sm:$0xf]
    %v1245 = vunpack.c.l.b16 %v1181
    %v1246 = vunpack.c.l.b16 %v1182
    %v1247 = vunpack.c.l.b16 %v1183
    %v1248 = vunpack.c.l.b16 %v1184
    %v1249 = vunpack.c.l.b16 %v1185
    %v1250 = vunpack.c.l.b16 %v1186
    %v1251 = vunpack.c.l.b16 %v1187
    %v1252 = vunpack.c.l.b16 %v1188
    %v1253 = vunpack.c.l.b16 %v1189
    %v1254 = vunpack.c.l.b16 %v1190
    %v1255 = vunpack.c.l.b16 %v1191
    %v1256 = vunpack.c.l.b16 %v1192
    %v1257 = vunpack.c.l.b16 %v1193
    %v1258 = vunpack.c.l.b16 %v1194
    %v1259 = vunpack.c.l.b16 %v1195
    %v1260 = vunpack.c.l.b16 %v1196
    %v1261 = vunpack.c.l.b16 %v1197
    %v1262 = vunpack.c.l.b16 %v1198
    %v1263 = vunpack.c.l.b16 %v1199
    %v1264 = vunpack.c.l.b16 %v1200
    %v1265 = vunpack.c.l.b16 %v1201
    %v1266 = vunpack.c.l.b16 %v1202
    %v1267 = vunpack.c.l.b16 %v1203
    %v1268 = vunpack.c.l.b16 %v1204
    %v1269 = vunpack.c.l.b16 %v1205
    %v1270 = vunpack.c.l.b16 %v1206
    %v1271 = vunpack.c.l.b16 %v1207
    %v1272 = vunpack.c.l.b16 %v1208
    %v1273 = vunpack.c.l.b16 %v1209
    %v1274 = vunpack.c.l.b16 %v1210
    %v1275 = vunpack.c.l.b16 %v1211
    %v1276 = vunpack.c.l.b16 %v1212
    %v1277 = vpack.c.b16 %v1246, %v1245
    %v1278 = vpack.c.b16 %v1248, %v1247
    %v1279 = vpack.c.b16 %v1250, %v1249
    %v1280 = vpack.c.b16 %v1252, %v1251
    %v1281 = vpack.c.b16 %v1254, %v1253
    %v1282 = vpack.c.b16 %v1256, %v1255
    %v1283 = vpack.c.b16 %v1258, %v1257
    %v1284 = vpack.c.b16 %v1260, %v1259
    %v1285 = vpack.c.b16 %v1262, %v1261
    %v1286 = vpack.c.b16 %v1264, %v1263
    %v1287 = vpack.c.b16 %v1266, %v1265
    %v1288 = vpack.c.b16 %v1268, %v1267
    %v1289 = vpack.c.b16 %v1270, %v1269
    %v1290 = vpack.c.b16 %v1272, %v1271
    %v1291 = vpack.c.b16 %v1274, %v1273
    %v1292 = vpack.c.b16 %v1276, %v1275
    %1309 = vmatprep.subr.bf16.mxu0 0
    %1310 = vmatpush1.bf16.msra.mxu0 %v1277
    %1311 = vmatprep.subr.bf16.mxu0 0
    %1312 = vmatpush1.bf16.msra.mxu0 %v1278
    %1313 = vmatprep.subr.bf16.mxu0 0
    %1314 = vmatpush1.bf16.msra.mxu0 %v1279
    %1315 = vmatprep.subr.bf16.mxu0 0
    %1316 = vmatpush1.bf16.msra.mxu0 %v1280
    %1317 = vmatprep.subr.bf16.mxu0 0
    %1318 = vmatpush1.bf16.msra.mxu0 %v1281
    %1319 = vmatprep.subr.bf16.mxu0 0
    %1320 = vmatpush1.bf16.msra.mxu0 %v1282
    %1321 = vmatprep.subr.bf16.mxu0 0
    %1322 = vmatpush1.bf16.msra.mxu0 %v1283
    %1323 = vmatprep.subr.bf16.mxu0 0
    %1324 = vmatpush1.bf16.msra.mxu0 %v1284
    %1325 = vmatprep.subr.bf16.mxu0 0
    %1326 = vmatpush1.bf16.msra.mxu0 %v1285
    %1327 = vmatprep.subr.bf16.mxu0 0
    %1328 = vmatpush1.bf16.msra.mxu0 %v1286
    %1329 = vmatprep.subr.bf16.mxu0 0
    %1330 = vmatpush1.bf16.msra.mxu0 %v1287
    %1331 = vmatprep.subr.bf16.mxu0 0
    %1332 = vmatpush1.bf16.msra.mxu0 %v1288
    %1333 = vmatprep.subr.bf16.mxu0 0
    %1334 = vmatpush1.bf16.msra.mxu0 %v1289
    %1335 = vmatprep.subr.bf16.mxu0 0
    %1336 = vmatpush1.bf16.msra.mxu0 %v1290
    %1337 = vmatprep.subr.bf16.mxu0 0
    %1338 = vmatpush1.bf16.msra.mxu0 %v1291
    %1339 = vmatprep.subr.bf16.mxu0 0
    %1340 = vmatpush1.bf16.msra.mxu0 %v1292
    %1341 = vmatprep.mubr.bf16.mxu0 %v1180
    %1342 = vmatmul.mubr.bf16.gmra.mrb[0].mxu0 %v1179
    %v1343 = vpop.f32.mrb[0].mxu0
    %v1344 = vadd.f32 0.0, %v1343
    %v1345 = vpop.f32.mrb[0].mxu0
    %v1346 = vpop.f32.mrb[0].mxu0
    %v1347 = vpop.f32.mrb[0].mxu0
    %1348 = vdwg.mxu0
    %v1349 = vadd.f32 %v1178, %v1344
    %v1350 = vmul.f32 %v1175, 0.9
    %v1351 = vtanh.pop %v1349
    %v1352 = vmul.f32 %v1351, 0.1
    %v1353 = vadd.f32 %v1350, %v1352
    %v1354 = vmul.f32 %v1176, 0.1
    %v1355 = vsub.f32 %v1353, %v1354
    %v1356 = vmul.f32 %v1355, 0.1
    %v1357 = vadd.f32 %v1176, %v1356
    %1358 = vst [vmem:[#allocation2] sm:$0xff] %v1355
    %1359 = vst [vmem:[#allocation2 + $0x8] sm:$0xff] %v1357
    %v1360 = vld [vmem:[#allocation2] sm:$0xff]
    %v1361 = vld [vmem:[#allocation2 + $0x8] sm:$0xff]
    %s1362 = scalar_lea.vmem [#allocation3], 56
    %v1363 = vld [vmem:[%s1362] sm:$0xff]
    %v1364 = vpack.c.bf16 %v1360, %v1360
    %v1365 = vpack.c.bf16 %v1361, %v1361
    %v1366 = vld [vmem:[#allocation6] sm:$0xf]
    %v1367 = vld [vmem:[#allocation6 + $0x4] sm:$0xf]
    %v1368 = vld [vmem:[#allocation6 + $0x8] sm:$0xf]
    %v1369 = vld [vmem:[#allocation6 + $0xc] sm:$0xf]
    %v1370 = vld [vmem:[#allocation6 + $0x10] sm:$0xf]
    %v1371 = vld [vmem:[#allocation6 + $0x14] sm:$0xf]
    %v1372 = vld [vmem:[#allocation6 + $0x18] sm:$0xf]
    %v1373 = vld [vmem:[#allocation6 + $0x1c] sm:$0xf]
    %v1374 = vld [vmem:[#allocation6 + $0x20] sm:$0xf]
    %v1375 = vld [vmem:[#allocation6 + $0x24] sm:$0xf]
    %v1376 = vld [vmem:[#allocation6 + $0x28] sm:$0xf]
    %v1377 = vld [vmem:[#allocation6 + $0x2c] sm:$0xf]
    %v1378 = vld [vmem:[#allocation6 + $0x30] sm:$0xf]
    %v1379 = vld [vmem:[#allocation6 + $0x34] sm:$0xf]
    %v1380 = vld [vmem:[#allocation6 + $0x38] sm:$0xf]
    %v1381 = vld [vmem:[#allocation6 + $0x3c] sm:$0xf]
    %v1382 = vld [vmem:[#allocation6 + $0x40] sm:$0xf]
    %v1383 = vld [vmem:[#allocation6 + $0x44] sm:$0xf]
    %v1384 = vld [vmem:[#allocation6 + $0x48] sm:$0xf]
    %v1385 = vld [vmem:[#allocation6 + $0x4c] sm:$0xf]
    %v1386 = vld [vmem:[#allocation6 + $0x50] sm:$0xf]
    %v1387 = vld [vmem:[#allocation6 + $0x54] sm:$0xf]
    %v1388 = vld [vmem:[#allocation6 + $0x58] sm:$0xf]
    %v1389 = vld [vmem:[#allocation6 + $0x5c] sm:$0xf]
    %v1390 = vld [vmem:[#allocation6 + $0x60] sm:$0xf]
    %v1391 = vld [vmem:[#allocation6 + $0x64] sm:$0xf]
    %v1392 = vld [vmem:[#allocation6 + $0x68] sm:$0xf]
    %v1393 = vld [vmem:[#allocation6 + $0x6c] sm:$0xf]
    %v1394 = vld [vmem:[#allocation6 + $0x70] sm:$0xf]
    %v1395 = vld [vmem:[#allocation6 + $0x74] sm:$0xf]
    %v1396 = vld [vmem:[#allocation6 + $0x78] sm:$0xf]
    %v1397 = vld [vmem:[#allocation6 + $0x7c] sm:$0xf]
    %v1430 = vunpack.c.l.b16 %v1366
    %v1431 = vunpack.c.l.b16 %v1367
    %v1432 = vunpack.c.l.b16 %v1368
    %v1433 = vunpack.c.l.b16 %v1369
    %v1434 = vunpack.c.l.b16 %v1370
    %v1435 = vunpack.c.l.b16 %v1371
    %v1436 = vunpack.c.l.b16 %v1372
    %v1437 = vunpack.c.l.b16 %v1373
    %v1438 = vunpack.c.l.b16 %v1374
    %v1439 = vunpack.c.l.b16 %v1375
    %v1440 = vunpack.c.l.b16 %v1376
    %v1441 = vunpack.c.l.b16 %v1377
    %v1442 = vunpack.c.l.b16 %v1378
    %v1443 = vunpack.c.l.b16 %v1379
    %v1444 = vunpack.c.l.b16 %v1380
    %v1445 = vunpack.c.l.b16 %v1381
    %v1446 = vunpack.c.l.b16 %v1382
    %v1447 = vunpack.c.l.b16 %v1383
    %v1448 = vunpack.c.l.b16 %v1384
    %v1449 = vunpack.c.l.b16 %v1385
    %v1450 = vunpack.c.l.b16 %v1386
    %v1451 = vunpack.c.l.b16 %v1387
    %v1452 = vunpack.c.l.b16 %v1388
    %v1453 = vunpack.c.l.b16 %v1389
    %v1454 = vunpack.c.l.b16 %v1390
    %v1455 = vunpack.c.l.b16 %v1391
    %v1456 = vunpack.c.l.b16 %v1392
    %v1457 = vunpack.c.l.b16 %v1393
    %v1458 = vunpack.c.l.b16 %v1394
    %v1459 = vunpack.c.l.b16 %v1395
    %v1460 = vunpack.c.l.b16 %v1396
    %v1461 = vunpack.c.l.b16 %v1397
    %v1462 = vpack.c.b16 %v1431, %v1430
    %v1463 = vpack.c.b16 %v1433, %v1432
    %v1464 = vpack.c.b16 %v1435, %v1434
    %v1465 = vpack.c.b16 %v1437, %v1436
    %v1466 = vpack.c.b16 %v1439, %v1438
    %v1467 = vpack.c.b16 %v1441, %v1440
    %v1468 = vpack.c.b16 %v1443, %v1442
    %v1469 = vpack.c.b16 %v1445, %v1444
    %v1470 = vpack.c.b16 %v1447, %v1446
    %v1471 = vpack.c.b16 %v1449, %v1448
    %v1472 = vpack.c.b16 %v1451, %v1450
    %v1473 = vpack.c.b16 %v1453, %v1452
    %v1474 = vpack.c.b16 %v1455, %v1454
    %v1475 = vpack.c.b16 %v1457, %v1456
    %v1476 = vpack.c.b16 %v1459, %v1458
    %v1477 = vpack.c.b16 %v1461, %v1460
    %1494 = vmatprep.subr.bf16.mxu0 0
    %1495 = vmatpush1.bf16.msra.mxu0 %v1462
    %1496 = vmatprep.subr.bf16.mxu0 0
    %1497 = vmatpush1.bf16.msra.mxu0 %v1463
    %1498 = vmatprep.subr.bf16.mxu0 0
    %1499 = vmatpush1.bf16.msra.mxu0 %v1464
    %1500 = vmatprep.subr.bf16.mxu0 0
    %1501 = vmatpush1.bf16.msra.mxu0 %v1465
    %1502 = vmatprep.subr.bf16.mxu0 0
    %1503 = vmatpush1.bf16.msra.mxu0 %v1466
    %1504 = vmatprep.subr.bf16.mxu0 0
    %1505 = vmatpush1.bf16.msra.mxu0 %v1467
    %1506 = vmatprep.subr.bf16.mxu0 0
    %1507 = vmatpush1.bf16.msra.mxu0 %v1468
    %1508 = vmatprep.subr.bf16.mxu0 0
    %1509 = vmatpush1.bf16.msra.mxu0 %v1469
    %1510 = vmatprep.subr.bf16.mxu0 0
    %1511 = vmatpush1.bf16.msra.mxu0 %v1470
    %1512 = vmatprep.subr.bf16.mxu0 0
    %1513 = vmatpush1.bf16.msra.mxu0 %v1471
    %1514 = vmatprep.subr.bf16.mxu0 0
    %1515 = vmatpush1.bf16.msra.mxu0 %v1472
    %1516 = vmatprep.subr.bf16.mxu0 0
    %1517 = vmatpush1.bf16.msra.mxu0 %v1473
    %1518 = vmatprep.subr.bf16.mxu0 0
    %1519 = vmatpush1.bf16.msra.mxu0 %v1474
    %1520 = vmatprep.subr.bf16.mxu0 0
    %1521 = vmatpush1.bf16.msra.mxu0 %v1475
    %1522 = vmatprep.subr.bf16.mxu0 0
    %1523 = vmatpush1.bf16.msra.mxu0 %v1476
    %1524 = vmatprep.subr.bf16.mxu0 0
    %1525 = vmatpush1.bf16.msra.mxu0 %v1477
    %1526 = vmatprep.mubr.bf16.mxu0 %v1365
    %1527 = vmatmul.mubr.bf16.gmra.mrb[0].mxu0 %v1364
    %v1528 = vpop.f32.mrb[0].mxu0
    %v1529 = vadd.f32 0.0, %v1528
    %v1530 = vpop.f32.mrb[0].mxu0
    %v1531 = vpop.f32.mrb[0].mxu0
    %v1532 = vpop.f32.mrb[0].mxu0
    %1533 = vdwg.mxu0
    %v1534 = vadd.f32 %v1363, %v1529
    %v1535 = vmul.f32 %v1360, 0.9
    %v1536 = vtanh.pop %v1534
    %v1537 = vmul.f32 %v1536, 0.1
    %v1538 = vadd.f32 %v1535, %v1537
    %v1539 = vmul.f32 %v1361, 0.1
    %v1540 = vsub.f32 %v1538, %v1539
    %v1541 = vmul.f32 %v1540, 0.1
    %v1542 = vadd.f32 %v1361, %v1541
    %1543 = vst [vmem:[#allocation2] sm:$0xff] %v1540
    %1544 = vst [vmem:[#allocation2 + $0x8] sm:$0xff] %v1542
    // Predicated region
    $region34: #{tpu_custom_call.1} parent=1 // pred_check
      %p1545 = pneg %p60
    $region35: #{tpu_custom_call.1} parent=1 // pred_check_branch
      %1547 = sbr.rel (%p1545) target = $region37
    $region36: #{tpu_custom_call.1} parent=1 // pred_region
      %v1548 = vld [vmem:[#allocation2 + $0x8] sm:$0xff]
      %v1549 = vpack.c.bf16 %v1548, %v1548
      %v1550 = vld [vmem:[#allocation8] sm:$0xf]
      %v1551 = vld [vmem:[#allocation8 + $0x4] sm:$0xf]
      %v1552 = vld [vmem:[#allocation8 + $0x8] sm:$0xf]
      %v1553 = vld [vmem:[#allocation8 + $0xc] sm:$0xf]
      %v1554 = vld [vmem:[#allocation8 + $0x10] sm:$0xf]
      %v1555 = vld [vmem:[#allocation8 + $0x14] sm:$0xf]
      %v1556 = vld [vmem:[#allocation8 + $0x18] sm:$0xf]
      %v1557 = vld [vmem:[#allocation8 + $0x1c] sm:$0xf]
      %v1558 = vld [vmem:[#allocation8 + $0x20] sm:$0xf]
      %v1559 = vld [vmem:[#allocation8 + $0x24] sm:$0xf]
      %v1560 = vld [vmem:[#allocation8 + $0x28] sm:$0xf]
      %v1561 = vld [vmem:[#allocation8 + $0x2c] sm:$0xf]
      %v1562 = vld [vmem:[#allocation8 + $0x30] sm:$0xf]
      %v1563 = vld [vmem:[#allocation8 + $0x34] sm:$0xf]
      %v1564 = vld [vmem:[#allocation8 + $0x38] sm:$0xf]
      %v1565 = vld [vmem:[#allocation8 + $0x3c] sm:$0xf]
      %v1566 = vld [vmem:[%s3] sm:$0x1]
      %v1568 = vlaneseq
      %v1569 = vshrl.u32 %v1568, 7
      %v1570 = vsub.s32 0, %v1569
      %v1571 = vrot.slane %v1566, %v1570
      %v1589 = vunpack.c.l.b16 %v1550
      %v1590 = vunpack.c.l.b16 %v1551
      %v1591 = vunpack.c.l.b16 %v1552
      %v1592 = vunpack.c.l.b16 %v1553
      %v1593 = vunpack.c.l.b16 %v1554
      %v1594 = vunpack.c.l.b16 %v1555
      %v1595 = vunpack.c.l.b16 %v1556
      %v1596 = vunpack.c.l.b16 %v1557
      %v1597 = vunpack.c.l.b16 %v1558
      %v1598 = vunpack.c.l.b16 %v1559
      %v1599 = vunpack.c.l.b16 %v1560
      %v1600 = vunpack.c.l.b16 %v1561
      %v1601 = vunpack.c.l.b16 %v1562
      %v1602 = vunpack.c.l.b16 %v1563
      %v1603 = vunpack.c.l.b16 %v1564
      %v1604 = vunpack.c.l.b16 %v1565
      %v1605 = vpack.c.b16 %v1590, %v1589
      %v1606 = vpack.c.b16 %v1592, %v1591
      %v1607 = vpack.c.b16 %v1594, %v1593
      %v1608 = vpack.c.b16 %v1596, %v1595
      %v1609 = vpack.c.b16 %v1598, %v1597
      %v1610 = vpack.c.b16 %v1600, %v1599
      %v1611 = vpack.c.b16 %v1602, %v1601
      %v1612 = vpack.c.b16 %v1604, %v1603
      %1621 = vmatprep.subr.bf16.mxu0 0
      %1622 = vmatpush1.bf16.msra.mxu0 %v1605
      %1623 = vmatprep.subr.bf16.mxu0 0
      %1624 = vmatpush1.bf16.msra.mxu0 %v1606
      %1625 = vmatprep.subr.bf16.mxu0 0
      %1626 = vmatpush1.bf16.msra.mxu0 %v1607
      %1627 = vmatprep.subr.bf16.mxu0 0
      %1628 = vmatpush1.bf16.msra.mxu0 %v1608
      %1629 = vmatprep.subr.bf16.mxu0 0
      %1630 = vmatpush1.bf16.msra.mxu0 %v1609
      %1631 = vmatprep.subr.bf16.mxu0 0
      %1632 = vmatpush1.bf16.msra.mxu0 %v1610
      %1633 = vmatprep.subr.bf16.mxu0 0
      %1634 = vmatpush1.bf16.msra.mxu0 %v1611
      %1635 = vmatprep.subr.bf16.mxu0 0
      %1636 = vmatpush1.bf16.msra.mxu0 %v1612
      %1637 = vmatprep.subr.bf16.mxu0 0
      %1638 = vmatpush1.bf16.msra.mxu0 0
      %1639 = vmatprep.subr.bf16.mxu0 0
      %1640 = vmatpush1.bf16.msra.mxu0 0
      %1641 = vmatprep.subr.bf16.mxu0 0
      %1642 = vmatpush1.bf16.msra.mxu0 0
      %1643 = vmatprep.subr.bf16.mxu0 0
      %1644 = vmatpush1.bf16.msra.mxu0 0
      %1645 = vmatprep.subr.bf16.mxu0 0
      %1646 = vmatpush1.bf16.msra.mxu0 0
      %1647 = vmatprep.subr.bf16.mxu0 0
      %1648 = vmatpush1.bf16.msra.mxu0 0
      %1649 = vmatprep.subr.bf16.mxu0 0
      %1650 = vmatpush1.bf16.msra.mxu0 0
      %1651 = vmatprep.subr.bf16.mxu0 0
      %1652 = vmatpush1.bf16.msra.mxu0 0
      %1653 = vmatprep.mubr.bf16.mxu0 0
      %1654 = vmatmul.mubr.bf16.gmra.mrb[0].mxu0 %v1549
      %v1655 = vpop.f32.mrb[0].mxu0
      %v1656 = vadd.f32 %v1571, %v1655
      %v1657 = vpop.f32.mrb[0].mxu0
      %v1658 = vpop.f32.mrb[0].mxu0
      %v1659 = vpop.f32.mrb[0].mxu0
      %1660 = vdwg.mxu0
      %1661 = vst [vmem:[#allocation9] sm:$0xff] %v1656
    $region37: #{tpu_custom_call.1} parent=1 // pred_fallthru
      _
    // Predicated region
    $region38: #{tpu_custom_call.1} parent=1 // pred_check
      _
    $region39: #{tpu_custom_call.1} parent=1 // pred_check_branch
      %1663 = sbr.rel (0) target = $region41
    $region40: #{tpu_custom_call.1} parent=1 // pred_region
      %s1665 = ssub.s32 128, 128
      %1666 = vsyncadd [#allocation5], %s1665
      %s1668 = sshll.u32 [#allocation9], 4
      %s1669 = int_to_ptr.vmem [resolvable:$true] %s1668
      %1671 = dma.vmem_to_hbm [thread:$0]  %s1669, 128, %s4, [#allocation5]
    $region41: #{tpu_custom_call.1} parent=1 // pred_fallthru
      _
    // Predicated region
    $region42: #{tpu_custom_call.1} parent=1 // pred_check
      _
    $region43: #{tpu_custom_call.1} parent=1 // pred_check_branch
      %1673 = sbr.rel (0) target = $region45
    $region44: #{tpu_custom_call.1} parent=1 // pred_region
      %1674 = dma.done [#allocation5], 128
    $region45: #{tpu_custom_call.1} parent=1 // pred_fallthru
      _
    %1675 = vsyncpa [#allocation4], 1
    %1676 = vsyncpa [#allocation7], 1
    %1677 = vsyncpa [#allocation5], 1

</llo_original>
